<compile_context>
chip_gen: v7x
topology: tpu7x:2x2x1
jax: 0.10.0
libtpu: 0.0.40
codegen_flags: <defaults>
</compile_context>

<pallas_src>
import functools

import jax
import jax.numpy as jnp
from jax.experimental import pallas as pl
from jax.experimental.pallas import tpu as pltpu

BN_EPS = 1e-5


# --------------------------------------------------------------------------------------
# Kernels
# --------------------------------------------------------------------------------------
def _taps_matmul(w_ref, xm_ref, xh_ref, *, offs, tm):
    """Build the 4 compact stride-2 taps from the (main + halo) x tile and run the
    combined phase matmul.  No patch array ever touches HBM.

    xm_ref: (Cin, tm)  main tile of the flattened, zero-haloed x.
    xh_ref: (Cin, hb)  halo block immediately following the main tile.
    Tap (dr, dc) of pixel column f lives at column f + dr*(W+1) + dc, i.e. a static
    lane shift of the concatenated tile.
    """
    xc = jnp.concatenate([xm_ref[...], xh_ref[...]], axis=1)              # (Cin, tm+hb)
    p = jnp.concatenate([xc[:, o:o + tm] for o in offs], axis=0)          # (4*Cin, tm)
    return jnp.dot(w_ref[...], p, preferred_element_type=jnp.float32)     # (4*Cout, tm) f32


def _stats_kernel(w_ref, xm_ref, xh_ref, mask_ref, mean_ref, m2_ref, *, offs, tm):
    """Pass A: per-tile centered BatchNorm statistics (mean, M2).  y never hits HBM."""
    y = _taps_matmul(w_ref, xm_ref, xh_ref, offs=offs, tm=tm)
    m = mask_ref[...]                                        # (1, tm): 1 valid / 0 pad col
    cnt = jnp.sum(m, axis=1, keepdims=True)                  # (1, 1)
    s = jnp.sum(y * m, axis=1, keepdims=True)                # (4*Cout, 1) lane reduce
    mu = s / jnp.maximum(cnt, 1.0)
    d = (y - mu) * m
    mean_ref[0] = mu
    m2_ref[0] = jnp.sum(d * d, axis=1, keepdims=True)


def _apply_kernel(w_ref, xm_ref, xh_ref, scale_ref, shift_ref, o_ref, *, offs, tm):
    """Pass B: recompute y from x, fused folded-BN affine (one FMA) + Swish.
    Output stores are full lane-dense (4*Cout, tm) f32 tiles (unmasked vst)."""
    y = _taps_matmul(w_ref, xm_ref, xh_ref, offs=offs, tm=tm)
    z = y * scale_ref[...] + shift_ref[...]
    o_ref[...] = (z * jax.nn.sigmoid(z)).astype(o_ref.dtype)


# --------------------------------------------------------------------------------------
# Glue helpers
# --------------------------------------------------------------------------------------
def _phase_weight(w):
    """Combined phase weight Wc^T: (4*Cout, 4*Cin).

    Row p*Cout + co with p = 2*r + c (output phase), col t*Cin + ci with t = 2*dr + dc
    (input tap x[i+dr, j+dc]).  For ConvTranspose2d(k=3, s=2, p=1, op=1):
      out[2i+r, 2j+c] += x[i+dr, j+dc] * w[ci, co, kh, kw],  kh = r+1-2*dr, kw = c+1-2*dc,
    taps whose kh/kw fall outside [0, 2] do not exist (zero block).
    """
    cin, cout = w.shape[0], w.shape[1]
    phase_rows = []
    for r in (0, 1):
        for c in (0, 1):
            tap_cols = []
            for dr in (0, 1):
                for dc in (0, 1):
                    kh = r + 1 - 2 * dr
                    kw = c + 1 - 2 * dc
                    if 0 <= kh <= 2 and 0 <= kw <= 2:
                        tap_cols.append(w[:, :, kh, kw].T)                 # (Cout, Cin)
                    else:
                        tap_cols.append(jnp.zeros((cout, cin), w.dtype))
            phase_rows.append(jnp.concatenate(tap_cols, axis=1))           # (Cout, 4*Cin)
    return jnp.concatenate(phase_rows, axis=0)                             # (4*Cout, 4*Cin)


def _flatten_halo(x, total_cols, compute_dtype):
    """x (N,Cin,H,W) -> channel-major, zero-haloed, flattened (Cin, total_cols).

    Single fused XLA transpose+pad+cast copy of x (replaces the old 4x patch array)."""
    n, cin, h, w_sp = x.shape
    xp = jnp.transpose(x, (1, 0, 2, 3))                          # (Cin, N, H, W)
    xp = jnp.pad(xp, ((0, 0), (0, 0), (0, 1), (0, 1)))           # zero halo bottom/right
    xp = xp.reshape(cin, n * (h + 1) * (w_sp + 1))
    return jnp.pad(xp, ((0, 0), (0, total_cols - xp.shape[1]))).astype(compute_dtype)


def _halo_map(tb):
    def idx(i):
        return (0, (i + 1) * tb)
    return idx


def _pick_tile(l_valid, hb, tm_target, cin, cout, cdb, vmem_budget):
    """tm: multiple of the halo block, fits the VMEM budget, and >=2 grid steps if possible."""
    c4, k4 = 4 * cout, 4 * cin

    def est(t):   # rough pass-B per-step working set (double-buffered IO + in-kernel temps)
        return (2 * c4 * k4 * cdb                                  # Wc^T (x2 buffers)
                + 7 * cin * t * cdb + 3 * cin * hb * cdb           # x tiles + tap temps
                + 12 * c4 * t + 8 * t)                             # y temp + out tiles + mask

    tm = max(hb, (int(tm_target) // hb) * hb)
    while tm > hb and est(tm) > vmem_budget:
        tm -= hb
    # keep >=2 grid steps when there is enough work (2 TensorCores on v7x)
    while tm > hb and l_valid > hb and pl.cdiv(l_valid, tm) < 2:
        tm -= hb
    return tm


# --------------------------------------------------------------------------------------
# Forward
# --------------------------------------------------------------------------------------
@functools.partial(jax.jit, static_argnames=("tm", "vmem_limit_bytes", "compute_dtype"))
def upsample_block(x, w, b, gamma, beta, *, tm=1024,
                   vmem_limit_bytes=48 * 1024 * 1024,
                   compute_dtype=jnp.bfloat16):
    """ConvTranspose2d(3, s=2, p=1, op=1) -> BatchNorm2d (training) -> Swish.

    x: (N, Cin, H, W) f32; w: (Cin, Cout, 3, 3) (PyTorch ConvTranspose2d layout).
    `b` (ConvTranspose2d bias) is accepted for API parity but unused: under training-mode
    BatchNorm it is exactly cancelled by the mean subtraction.
    compute_dtype: matmul operand dtype (bf16 default -- MXU-native on v6e/v7x, halves x
    DMA); accumulation, BN statistics, the folded affine and the output stay f32.
    Raise vmem_limit_bytes (and tm) on v5e/v6e (128 MiB VMEM); keep <=48 MiB on v7x.
    """
    del b
    n, cin, h, w_sp = x.shape
    cout = w.shape[1]
    c4, k4 = 4 * cout, 4 * cin
    mi = n * h * w_sp                                # valid pixel columns (one per 2x2 block)
    l_valid = n * (h + 1) * (w_sp + 1)               # flattened zero-haloed length
    cdb = jnp.dtype(compute_dtype).itemsize

    hb = pl.cdiv(w_sp + 2, 128) * 128                # halo block covering the largest tap shift
    tm = _pick_tile(l_valid, hb, tm, cin, cout, cdb, int(0.75 * vmem_limit_bytes))
    nt = pl.cdiv(l_valid, tm)
    l_main = nt * tm
    l_total = l_main + hb                            # + one halo block past the end
    tb = tm // hb
    offs = (0, 1, w_sp + 1, w_sp + 2)                # taps (dr,dc) = (0,0),(0,1),(1,0),(1,1)

    # ---- glue: one fused copy of x, combined phase weight, validity mask -----------------
    xp = _flatten_halo(x, l_total, compute_dtype)                        # (Cin, l_total)
    wct = _phase_weight(w).astype(compute_dtype)                         # (4*Cout, 4*Cin)
    mask = jnp.pad(jnp.ones((n, h, w_sp), jnp.float32),
                   ((0, 0), (0, 1), (0, 1))).reshape(1, l_valid)
    mask = jnp.pad(mask, ((0, 0), (0, l_main - l_valid)))                # (1, l_main)

    cparams = pltpu.CompilerParams(dimension_semantics=("parallel",),
                                   vmem_limit_bytes=vmem_limit_bytes)
    w_spec = pl.BlockSpec((c4, k4), lambda i: (0, 0))
    x_main_spec = pl.BlockSpec((cin, tm), lambda i: (0, i))
    x_halo_spec = pl.BlockSpec((cin, hb), _halo_map(tb))

    # ---- pass A: BN statistics only (y never written to HBM) -----------------------------
    mean_t, m2_t = pl.pallas_call(
        functools.partial(_stats_kernel, offs=offs, tm=tm),
        out_shape=(jax.ShapeDtypeStruct((nt, c4, 1), jnp.float32),
                   jax.ShapeDtypeStruct((nt, c4, 1), jnp.float32)),
        grid=(nt,),
        in_specs=[w_spec, x_main_spec, x_halo_spec,
                  pl.BlockSpec((1, tm), lambda i: (0, i))],
        out_specs=(pl.BlockSpec((1, c4, 1), lambda i: (i, 0, 0)),
                   pl.BlockSpec((1, c4, 1), lambda i: (i, 0, 0))),
        compiler_params=cparams,
    )(wct, xp, xp, mask)

    # ---- glue: Chan-style combine of per-tile (count, mean, M2) -> folded BN affine ------
    cnt_t = jnp.sum(mask.reshape(nt, tm), axis=1)                        # exact ints, f32
    mean_tp = mean_t[:, :, 0].reshape(nt, 4, cout)
    m2_tp = m2_t[:, :, 0].reshape(nt, 4, cout)
    total = jnp.float32(4 * mi)                                          # = N*(2H)*(2W)
    w_tile = cnt_t[:, None, None]
    mean_c = jnp.sum(w_tile * mean_tp, axis=(0, 1)) / total              # (Cout,)
    m2_c = jnp.sum(m2_tp + w_tile * jnp.square(mean_tp - mean_c[None, None, :]),
                   axis=(0, 1))
    var_c = m2_c / total
    scale = gamma.astype(jnp.float32) * jax.lax.rsqrt(var_c + BN_EPS)
    shift = beta.astype(jnp.float32) - mean_c * scale
    scale_rows = jnp.tile(scale, 4).reshape(c4, 1)
    shift_rows = jnp.tile(shift, 4).reshape(c4, 1)

    # ---- pass B: recompute y, fused BN affine + Swish, lane-dense f32 stores -------------
    out_flat = pl.pallas_call(
        functools.partial(_apply_kernel, offs=offs, tm=tm),
        out_shape=jax.ShapeDtypeStruct((c4, l_main), jnp.float32),
        grid=(nt,),
        in_specs=[w_spec, x_main_spec, x_halo_spec,
                  pl.BlockSpec((c4, 1), lambda i: (0, 0)),
                  pl.BlockSpec((c4, 1), lambda i: (0, 0))],
        out_specs=pl.BlockSpec((c4, tm), lambda i: (0, i)),
        compiler_params=cparams,
    )(wct, xp, xp, scale_rows, shift_rows)

    # ---- glue: drop halo/pad columns, interleave the 4 phases back to NCHW ---------------
    # TODO(synk): this de-interleave is one extra XLA read+write of the output; folding it
    # into pass B needs stride-2 lane stores (masked) -- measure before committing.
    out6 = out_flat[:, :l_valid].reshape(2, 2, cout, n, h + 1, w_sp + 1)[:, :, :, :, :h, :w_sp]
    return out6.transpose(3, 2, 4, 0, 5, 1).reshape(n, cout, 2 * h, 2 * w_sp)


# --------------------------------------------------------------------------------------
# Reference + test
# --------------------------------------------------------------------------------------
def _reference(x, w, b, gamma, beta):
    """Pure-JAX reference of the PyTorch forward (training-mode BatchNorm)."""
    w_conv = jnp.transpose(w[:, :, ::-1, ::-1], (1, 0, 2, 3))            # (Cout, Cin, 3, 3)
    y = jax.lax.conv_general_dilated(
        x, w_conv, window_strides=(1, 1), padding=((1, 2), (1, 2)),
        lhs_dilation=(2, 2), dimension_numbers=("NCHW", "OIHW", "NCHW"))
    y = y + b[None, :, None, None]
    mean = y.mean(axis=(0, 2, 3), keepdims=True)
    var = y.var(axis=(0, 2, 3), keepdims=True)
    z = gamma[None, :, None, None] * (y - mean) / jnp.sqrt(var + BN_EPS) + beta[None, :, None, None]
    return z * jax.nn.sigmoid(z)


if __name__ == "__main__":
    N, Cin, Cout, H, W = 2, 4, 8, 16, 16
    keys = jax.random.split(jax.random.PRNGKey(0), 5)

    x = jax.random.normal(keys[0], (N, Cin, H, W), jnp.float32)
    # deterministic synthetic parameters (shapes from nn.ConvTranspose2d / nn.BatchNorm2d)
    w = 0.1 * jax.random.normal(keys[1], (Cin, Cout, 3, 3), jnp.float32)  # (in, out, kH, kW)
    b = 0.1 * jax.random.normal(keys[2], (Cout,), jnp.float32)
    gamma = 1.0 + 0.1 * jax.random.normal(keys[3], (Cout,), jnp.float32)
    beta = 0.1 * jax.random.normal(keys[4], (Cout,), jnp.float32)

    ref = _reference(x, w, b, gamma, beta)

    # f32 operand path (tight check); tm=256 exercises the multi-tile "parallel" path.
    out_f32 = upsample_block(x, w, b, gamma, beta, tm=256, compute_dtype=jnp.float32)
    jax.block_until_ready(out_f32)
    assert out_f32.shape == (N, Cout, 2 * H, 2 * W), out_f32.shape
    err32 = float(jnp.max(jnp.abs(out_f32 - ref)))
    assert jnp.allclose(out_f32, ref, atol=2e-3, rtol=2e-3), err32

    # default bf16-operand path (recommended for v6e/v7x); stats/affine/output stay f32.
    out_bf16 = upsample_block(x, w, b, gamma, beta)
    jax.block_until_ready(out_bf16)
    err16 = float(jnp.max(jnp.abs(out_bf16 - ref)))
    assert jnp.allclose(out_bf16, ref, atol=1e-1, rtol=1e-1), err16

    # TODO(synk): BatchNorm running_mean/running_var buffer updates are not produced
    # (forward output in training mode does not depend on them).
    print("KERNEL_OK")
</pallas_src>

<mosaic_0001>
module attributes {stable_mosaic.version = 11 : i64} {
  func.func @_stats_kernel(%arg0: i32, %arg1: memref<32x16xf32, #tpu.memory_space<vmem>>, %arg2: memref<4x256xf32, #tpu.memory_space<vmem>>, %arg3: memref<4x128xf32, #tpu.memory_space<vmem>>, %arg4: memref<1x256xf32, #tpu.memory_space<vmem>>, %arg5: memref<1x32x1xf32, #tpu.memory_space<vmem>>, %arg6: memref<1x32x1xf32, #tpu.memory_space<vmem>>) attributes {dimension_semantics = [#tpu.dimension_semantics<parallel>], iteration_bounds = array<i64: 3>, scalar_prefetch = 0 : i64, scratch_operands = 0 : i64, tpu.core_type = #tpu.core_type<tc>, window_params = [{pipeline_mode = #tpu.pipeline_mode<synchronous>, transform_indices = @transform_0, window_bounds = array<i64: 32, 16>}, {transform_indices = @transform_1, window_bounds = array<i64: 4, 256>}, {transform_indices = @transform_2, window_bounds = array<i64: 4, 128>}, {transform_indices = @transform_3, window_bounds = array<i64: 1, 256>}, {transform_indices = @transform_4, window_bounds = array<i64: 1, 32, 1>}, {transform_indices = @transform_5, window_bounds = array<i64: 1, 32, 1>}]} {
    %c0 = arith.constant 0 : index
    %c0_0 = arith.constant 0 : index
    %0 = vector.load %arg2[%c0, %c0_0] : memref<4x256xf32, #tpu.memory_space<vmem>>, vector<4x256xf32>
    %c0_1 = arith.constant 0 : index
    %c0_2 = arith.constant 0 : index
    %1 = vector.load %arg3[%c0_1, %c0_2] : memref<4x128xf32, #tpu.memory_space<vmem>>, vector<4x128xf32>
    %2 = tpu.concatenate %0, %1 in 1 : vector<4x256xf32>, vector<4x128xf32> -> vector<4x384xf32>
    %3 = vector.extract_strided_slice %2 {offsets = [0, 0], sizes = [4, 256], strides = [1, 1]} : vector<4x384xf32> to vector<4x256xf32>
    %4 = vector.extract_strided_slice %2 {offsets = [0, 1], sizes = [4, 256], strides = [1, 1]} : vector<4x384xf32> to vector<4x256xf32>
    %5 = vector.extract_strided_slice %2 {offsets = [0, 17], sizes = [4, 256], strides = [1, 1]} : vector<4x384xf32> to vector<4x256xf32>
    %6 = vector.extract_strided_slice %2 {offsets = [0, 18], sizes = [4, 256], strides = [1, 1]} : vector<4x384xf32> to vector<4x256xf32>
    %7 = tpu.concatenate %3, %4, %5, %6 in 0 : vector<4x256xf32>, vector<4x256xf32>, vector<4x256xf32>, vector<4x256xf32> -> vector<16x256xf32>
    %c0_3 = arith.constant 0 : index
    %c0_4 = arith.constant 0 : index
    %8 = vector.load %arg1[%c0_3, %c0_4] : memref<32x16xf32, #tpu.memory_space<vmem>>, vector<32x16xf32>
    %cst = arith.constant dense<0.000000e+00> : vector<32x256xf32>
    %9 = tpu.matmul %8, %7, %cst {dimension_numbers = #tpu.dot_dimension_numbers<[1], [0], [0], [1], [0, 0, 1, 1], [], []>} : vector<32x16xf32>, vector<16x256xf32>, vector<32x256xf32> -> vector<32x256xf32>
    %c0_5 = arith.constant 0 : index
    %c0_6 = arith.constant 0 : index
    %10 = vector.load %arg4[%c0_5, %c0_6] : memref<1x256xf32, #tpu.memory_space<vmem>>, vector<1x256xf32>
    %cst_7 = arith.constant dense<0.000000e+00> : vector<1xf32>
    %11 = vector.multi_reduction <add>, %10, %cst_7 [1] : vector<1x256xf32> to vector<1xf32>
    %12 = vector.shape_cast %11 : vector<1xf32> to vector<1x1xf32>
    %13 = vector.broadcast %10 : vector<1x256xf32> to vector<32x256xf32>
    %14 = arith.mulf %9, %13 : vector<32x256xf32>
    %cst_8 = arith.constant dense<0.000000e+00> : vector<32xf32>
    %15 = vector.multi_reduction <add>, %14, %cst_8 [1] : vector<32x256xf32> to vector<32xf32>
    %16 = vector.shape_cast %15 : vector<32xf32> to vector<32x1xf32>
    %cst_9 = arith.constant 1.000000e+00 : f32
    %17 = vector.broadcast %cst_9 : f32 to vector<1x1xf32>
    %18 = arith.maximumf %12, %17 : vector<1x1xf32>
    %19 = vector.broadcast %18 : vector<1x1xf32> to vector<32x1xf32>
    %20 = arith.divf %16, %19 : vector<32x1xf32>
    %21 = vector.broadcast %20 : vector<32x1xf32> to vector<32x256xf32>
    %22 = arith.subf %9, %21 : vector<32x256xf32>
    %23 = vector.broadcast %10 : vector<1x256xf32> to vector<32x256xf32>
    %24 = arith.mulf %22, %23 : vector<32x256xf32>
    %c0_10 = arith.constant 0 : index
    %c0_11 = arith.constant 0 : index
    %c0_12 = arith.constant 0 : index
    %25 = vector.load %arg5[%c0_10, %c0_11, %c0_12] : memref<1x32x1xf32, #tpu.memory_space<vmem>>, vector<1x32x1xf32>
    %26 = vector.shape_cast %25 : vector<1x32x1xf32> to vector<32x1xf32>
    %27 = vector.shape_cast %20 : vector<32x1xf32> to vector<1x32x1xf32>
    tpu.vector_store %arg5[%c0_10, %c0_11, %c0_12], %27 {strides = array<i32>} : memref<1x32x1xf32, #tpu.memory_space<vmem>>, vector<1x32x1xf32>,
    %28 = arith.mulf %24, %24 : vector<32x256xf32>
    %cst_13 = arith.constant dense<0.000000e+00> : vector<32xf32>
    %29 = vector.multi_reduction <add>, %28, %cst_13 [1] : vector<32x256xf32> to vector<32xf32>
    %30 = vector.shape_cast %29 : vector<32xf32> to vector<32x1xf32>
    %c0_14 = arith.constant 0 : index
    %c0_15 = arith.constant 0 : index
    %c0_16 = arith.constant 0 : index
    %31 = vector.load %arg6[%c0_14, %c0_15, %c0_16] : memref<1x32x1xf32, #tpu.memory_space<vmem>>, vector<1x32x1xf32>
    %32 = vector.shape_cast %31 : vector<1x32x1xf32> to vector<32x1xf32>
    %33 = vector.shape_cast %30 : vector<32x1xf32> to vector<1x32x1xf32>
    tpu.vector_store %arg6[%c0_14, %c0_15, %c0_16], %33 {strides = array<i32>} : memref<1x32x1xf32, #tpu.memory_space<vmem>>, vector<1x32x1xf32>,
    return
  }
  func.func @transform_0(%arg0: i32) -> (i32, i32) {
    %c0_i32 = arith.constant 0 : i32
    %c0_i32_0 = arith.constant 0 : i32
    %c0_i32_1 = arith.constant 0 : i32
    return %c0_i32, %c0_i32_0 : i32, i32
  }
  func.func @transform_1(%arg0: i32) -> (i32, i32) {
    %c0_i32 = arith.constant 0 : i32
    %c0_i32_0 = arith.constant 0 : i32
    return %c0_i32, %arg0 : i32, i32
  }
  func.func @transform_2(%arg0: i32) -> (i32, i32) {
    %c1_i32 = arith.constant 1 : i32
    %0 = arith.addi %arg0, %c1_i32 : i32
    %c2_i32 = arith.constant 2 : i32
    %1 = arith.muli %0, %c2_i32 : i32
    %c0_i32 = arith.constant 0 : i32
    %c0_i32_0 = arith.constant 0 : i32
    return %c0_i32, %1 : i32, i32
  }
  func.func @transform_3(%arg0: i32) -> (i32, i32) {
    %c0_i32 = arith.constant 0 : i32
    %c0_i32_0 = arith.constant 0 : i32
    return %c0_i32, %arg0 : i32, i32
  }
  func.func @transform_4(%arg0: i32) -> (i32, i32, i32) {
    %c0_i32 = arith.constant 0 : i32
    %c0_i32_0 = arith.constant 0 : i32
    %c0_i32_1 = arith.constant 0 : i32
    return %arg0, %c0_i32, %c0_i32_0 : i32, i32, i32
  }
  func.func @transform_5(%arg0: i32) -> (i32, i32, i32) {
    %c0_i32 = arith.constant 0 : i32
    %c0_i32_0 = arith.constant 0 : i32
    %c0_i32_1 = arith.constant 0 : i32
    return %arg0, %c0_i32, %c0_i32_0 : i32, i32, i32
  }
}

module attributes {stable_mosaic.version = 11 : i64} {
  func.func @_apply_kernel(%arg0: i32, %arg1: memref<32x16xf32, #tpu.memory_space<vmem>>, %arg2: memref<4x256xf32, #tpu.memory_space<vmem>>, %arg3: memref<4x128xf32, #tpu.memory_space<vmem>>, %arg4: memref<32x1xf32, #tpu.memory_space<vmem>>, %arg5: memref<32x1xf32, #tpu.memory_space<vmem>>, %arg6: memref<32x256xf32, #tpu.memory_space<vmem>>) attributes {dimension_semantics = [#tpu.dimension_semantics<parallel>], iteration_bounds = array<i64: 3>, scalar_prefetch = 0 : i64, scratch_operands = 0 : i64, tpu.core_type = #tpu.core_type<tc>, window_params = [{pipeline_mode = #tpu.pipeline_mode<synchronous>, transform_indices = @transform_0, window_bounds = array<i64: 32, 16>}, {transform_indices = @transform_1, window_bounds = array<i64: 4, 256>}, {transform_indices = @transform_2, window_bounds = array<i64: 4, 128>}, {pipeline_mode = #tpu.pipeline_mode<synchronous>, transform_indices = @transform_3, window_bounds = array<i64: 32, 1>}, {pipeline_mode = #tpu.pipeline_mode<synchronous>, transform_indices = @transform_4, window_bounds = array<i64: 32, 1>}, {transform_indices = @transform_5, window_bounds = array<i64: 32, 256>}]} {
    %c0 = arith.constant 0 : index
    %c0_0 = arith.constant 0 : index
    %0 = vector.load %arg2[%c0, %c0_0] : memref<4x256xf32, #tpu.memory_space<vmem>>, vector<4x256xf32>
    %c0_1 = arith.constant 0 : index
    %c0_2 = arith.constant 0 : index
    %1 = vector.load %arg3[%c0_1, %c0_2] : memref<4x128xf32, #tpu.memory_space<vmem>>, vector<4x128xf32>
    %2 = tpu.concatenate %0, %1 in 1 : vector<4x256xf32>, vector<4x128xf32> -> vector<4x384xf32>
    %3 = vector.extract_strided_slice %2 {offsets = [0, 0], sizes = [4, 256], strides = [1, 1]} : vector<4x384xf32> to vector<4x256xf32>
    %4 = vector.extract_strided_slice %2 {offsets = [0, 1], sizes = [4, 256], strides = [1, 1]} : vector<4x384xf32> to vector<4x256xf32>
    %5 = vector.extract_strided_slice %2 {offsets = [0, 17], sizes = [4, 256], strides = [1, 1]} : vector<4x384xf32> to vector<4x256xf32>
    %6 = vector.extract_strided_slice %2 {offsets = [0, 18], sizes = [4, 256], strides = [1, 1]} : vector<4x384xf32> to vector<4x256xf32>
    %7 = tpu.concatenate %3, %4, %5, %6 in 0 : vector<4x256xf32>, vector<4x256xf32>, vector<4x256xf32>, vector<4x256xf32> -> vector<16x256xf32>
    %c0_3 = arith.constant 0 : index
    %c0_4 = arith.constant 0 : index
    %8 = vector.load %arg1[%c0_3, %c0_4] : memref<32x16xf32, #tpu.memory_space<vmem>>, vector<32x16xf32>
    %cst = arith.constant dense<0.000000e+00> : vector<32x256xf32>
    %9 = tpu.matmul %8, %7, %cst {dimension_numbers = #tpu.dot_dimension_numbers<[1], [0], [0], [1], [0, 0, 1, 1], [], []>} : vector<32x16xf32>, vector<16x256xf32>, vector<32x256xf32> -> vector<32x256xf32>
    %c0_5 = arith.constant 0 : index
    %c0_6 = arith.constant 0 : index
    %10 = vector.load %arg4[%c0_5, %c0_6] : memref<32x1xf32, #tpu.memory_space<vmem>>, vector<32x1xf32>
    %11 = vector.broadcast %10 : vector<32x1xf32> to vector<32x256xf32>
    %12 = arith.mulf %9, %11 : vector<32x256xf32>
    %c0_7 = arith.constant 0 : index
    %c0_8 = arith.constant 0 : index
    %13 = vector.load %arg5[%c0_7, %c0_8] : memref<32x1xf32, #tpu.memory_space<vmem>>, vector<32x1xf32>
    %14 = vector.broadcast %13 : vector<32x1xf32> to vector<32x256xf32>
    %15 = arith.addf %12, %14 : vector<32x256xf32>
    %16 = arith.negf %15 : vector<32x256xf32>
    %17 = math.exp %16 : vector<32x256xf32>
    %cst_9 = arith.constant 1.000000e+00 : f32
    %18 = vector.broadcast %cst_9 : f32 to vector<32x256xf32>
    %19 = arith.addf %18, %17 : vector<32x256xf32>
    %20 = arith.divf %18, %19 : vector<32x256xf32>
    %21 = arith.mulf %15, %20 : vector<32x256xf32>
    %c0_10 = arith.constant 0 : index
    %c0_11 = arith.constant 0 : index
    %22 = vector.load %arg6[%c0_10, %c0_11] : memref<32x256xf32, #tpu.memory_space<vmem>>, vector<32x256xf32>
    tpu.vector_store %arg6[%c0_10, %c0_11], %21 {strides = array<i32>} : memref<32x256xf32, #tpu.memory_space<vmem>>, vector<32x256xf32>,
    return
  }
  func.func @transform_0(%arg0: i32) -> (i32, i32) {
    %c0_i32 = arith.constant 0 : i32
    %c0_i32_0 = arith.constant 0 : i32
    %c0_i32_1 = arith.constant 0 : i32
    return %c0_i32, %c0_i32_0 : i32, i32
  }
  func.func @transform_1(%arg0: i32) -> (i32, i32) {
    %c0_i32 = arith.constant 0 : i32
    %c0_i32_0 = arith.constant 0 : i32
    return %c0_i32, %arg0 : i32, i32
  }
  func.func @transform_2(%arg0: i32) -> (i32, i32) {
    %c1_i32 = arith.constant 1 : i32
    %0 = arith.addi %arg0, %c1_i32 : i32
    %c2_i32 = arith.constant 2 : i32
    %1 = arith.muli %0, %c2_i32 : i32
    %c0_i32 = arith.constant 0 : i32
    %c0_i32_0 = arith.constant 0 : i32
    return %c0_i32, %1 : i32, i32
  }
  func.func @transform_3(%arg0: i32) -> (i32, i32) {
    %c0_i32 = arith.constant 0 : i32
    %c0_i32_0 = arith.constant 0 : i32
    %c0_i32_1 = arith.constant 0 : i32
    return %c0_i32, %c0_i32_0 : i32, i32
  }
  func.func @transform_4(%arg0: i32) -> (i32, i32) {
    %c0_i32 = arith.constant 0 : i32
    %c0_i32_0 = arith.constant 0 : i32
    %c0_i32_1 = arith.constant 0 : i32
    return %c0_i32, %c0_i32_0 : i32, i32
  }
  func.func @transform_5(%arg0: i32) -> (i32, i32) {
    %c0_i32 = arith.constant 0 : i32
    %c0_i32_0 = arith.constant 0 : i32
    return %c0_i32, %arg0 : i32, i32
  }
}

</mosaic_0001>

<llo_original>
// kernel: tile.0
$region0: #{tile.0}
  %s0 = inlined_call_operand.vmem [shape: f32[4,8], index: 0, kind: input, shape index: {}]
  %s1 = inlined_call_operand.vmem [shape: f32[32,1], index: 1, kind: output, shape index: {}]
  $region1: #{tile.0} parent=0
    #allocation0 [shape = 'u8[4096]{0}', space=vmem, size = 0x1000, scoped, tag = 'scoped mem for input reshape']
    %s3 = sshllo.u32 0, 4
    %v4 = vld [vmem:[%s0] sm:%s3]
    %5 = vst [vmem:[#allocation0] sm:%s3] %v4
    %v6 = vld [vmem:[#allocation0] sm:$0xf]
    %vm7 = vcmask 7168
    %8 = vst.msk [vmem:[%s1] ss:$8 sm:$0xf] %vm7, %v6
    %v9 = vld [vmem:[#allocation0] sm:$0xf]
    %10 = vrot.lane.b32.xlu0 %v9, 127
    %v11 = vpop.permute.xlu0 %10
    %vm12 = vcmask 7168
    %s13 = scalar_lea.vmem %s1, 1
    %14 = vst.msk [vmem:[%s13] ss:$8 sm:$0xf] %vm12, %v11
    %v15 = vld [vmem:[#allocation0] sm:$0xf]
    %16 = vrot.lane.b32.xlu0 %v15, 126
    %v17 = vpop.permute.xlu0 %16
    %vm18 = vcmask 7168
    %s19 = scalar_lea.vmem %s1, 2
    %20 = vst.msk [vmem:[%s19] ss:$8 sm:$0xf] %vm18, %v17
    %v21 = vld [vmem:[#allocation0] sm:$0xf]
    %22 = vrot.lane.b32.xlu0 %v21, 125
    %v23 = vpop.permute.xlu0 %22
    %vm24 = vcmask 7168
    %s25 = scalar_lea.vmem %s1, 3
    %26 = vst.msk [vmem:[%s25] ss:$8 sm:$0xf] %vm24, %v23
    %v27 = vld [vmem:[#allocation0] sm:$0xf]
    %28 = vrot.lane.b32.xlu0 %v27, 124
    %v29 = vpop.permute.xlu0 %28
    %vm30 = vcmask 7168
    %s31 = scalar_lea.vmem %s1, 4
    %32 = vst.msk [vmem:[%s31] ss:$8 sm:$0xf] %vm30, %v29
    %v33 = vld [vmem:[#allocation0] sm:$0xf]
    %34 = vrot.lane.b32.xlu0 %v33, 123
    %v35 = vpop.permute.xlu0 %34
    %vm36 = vcmask 7168
    %s37 = scalar_lea.vmem %s1, 5
    %38 = vst.msk [vmem:[%s37] ss:$8 sm:$0xf] %vm36, %v35
    %v39 = vld [vmem:[#allocation0] sm:$0xf]
    %40 = vrot.lane.b32.xlu0 %v39, 122
    %v41 = vpop.permute.xlu0 %40
    %vm42 = vcmask 7168
    %s43 = scalar_lea.vmem %s1, 6
    %44 = vst.msk [vmem:[%s43] ss:$8 sm:$0xf] %vm42, %v41
    %v45 = vld [vmem:[#allocation0] sm:$0xf]
    %46 = vrot.lane.b32.xlu0 %v45, 121
    %v47 = vpop.permute.xlu0 %46
    %vm48 = vcmask 7168
    %s49 = scalar_lea.vmem %s1, 7
    %50 = vst.msk [vmem:[%s49] ss:$8 sm:$0xf] %vm48, %v47

// kernel: upsample_block.2
$region0: #{upsample_block.2}
  #allocation0 [shape = 'u32[]', space=smem, size = 0x4, offset = 0x4, fixed_abs, tag = 'smem constant byte address 0x4 - core index']
  #allocation1 [shape = 'u32[144,128]{1,0:T(1,128)}', space=vmem, size = 0x12000, scoped, tag = 'internal scratch']
  %s0 = inlined_call_operand.vmem [shape: f32[32,16], index: 0, kind: input, shape index: {}]
  %s1 = inlined_call_operand.vmem [shape: f32[4,896], index: 1, kind: input, shape index: {}, may-alias: {1,2}]
  %s2 = inlined_call_operand.vmem [shape: f32[4,896], index: 2, kind: input, shape index: {}, may-alias: {1,2}]
  %s3 = inlined_call_operand.vmem [shape: f32[1,768], index: 3, kind: input, shape index: {}]
  %s4 = inlined_call_operand.vmem [shape: f32[3,32,1], index: 4, kind: output, shape index: {0}]
  %s5 = inlined_call_operand.vmem [shape: f32[3,32,1], index: 5, kind: output, shape index: {1}]
  %6 = xla_tuple %s4, %s5
  %s7 = sld [smem:[#allocation0]]
  $region57: #{upsample_block.2} parent=0
    _
  %s9 = ssub.s32 1, %s7
  %s10 = scalar_select 0, %s9, %s7
  loop: start=0, step=1, limit=5
  $region2: #{upsample_block.2} parent=0 // loop_pre_header
    _
  $region3: #{upsample_block.2} parent=0 // loop_header
    %s12 = sphi 0, %s16
    %p13 = scmp.ge.s32.totalorder %s12, 5
    %s20 = sphi 0, %s20
    %s22 = sphi 0, %s20
    %s23 = sphi 0, %s22
    %s37 = sphi 0, %s23
    %s43 = sphi 0, %s45
    %s46 = sphi 0, %s43
    %s47 = sphi 0, %s46
    %s63 = sphi 0, %s47
    %s73 = sphi 0, %s75
    %s76 = sphi 0, %s73
    %s77 = sphi 0, %s76
    %s93 = sphi 0, %s77
    %s99 = sphi 0, %s101
    %s102 = sphi 0, %s99
    %s103 = sphi 0, %s102
    %s119 = sphi 0, %s103
    %s125 = sphi 0, %s127
    %s128 = sphi 0, %s125
    %s129 = sphi 0, %s128
    %s145 = sphi 0, %s129
    %s151 = sphi 0, %s153
    %s154 = sphi 0, %s151
    %s155 = sphi 0, %s154
    %s171 = sphi 0, %s155
  $region4: #{upsample_block.2} parent=0 // loop_header_branch
    %15 = sbr.rel (%p13) target = $region8
  $region5: #{upsample_block.2} parent=0 // loop_body
    %s17 = ssub.s32 %s12, 1
    %s18 = ssub.s32 %s12, 2
    %s19 = sadd.s32 %s12, 1
    %s21 = sadd.s32 %s20, 1
    %p24 = scmp.eq.s32.totalorder %s12, 2
    %p25 = scmp.ne.s32.totalorder %s20, %s22
    %p26 = scmp.eq.s32.totalorder %s12, 0
    %p27 = por %p25, %p26
    %p28 = scmp.ne.s32.totalorder %s20, %s22
    %p29 = scmp.eq.s32.totalorder %s17, 2
    %p30 = por %p28, %p29
    %p31 = scmp.ne.s32.totalorder %s22, %s23
    %p32 = scmp.eq.s32.totalorder %s17, 0
    %p33 = por %p31, %p32
    %p34 = scmp.ne.s32.totalorder %s22, %s23
    %p35 = scmp.eq.s32.totalorder %s18, 2
    %p36 = por %p34, %p35
    %p38 = scmp.ne.s32.totalorder %s23, %s37
    %p39 = scmp.eq.s32.totalorder %s18, 0
    %p40 = por %p38, %p39
    %s41 = ssub.s32 %s12, %s19
    %p42 = scmp.eq.s32.totalorder %s41, 0
    %s44 = sadd.s32 %s43, 1
    %s45 = scalar_select %p42, %s43, %s44
    %p48 = pneg %p42
    %p49 = scmp.eq.s32.totalorder %s12, 2
    %p50 = por %p48, %p49
    %p51 = scmp.ne.s32.totalorder %s43, %s46
    %p52 = scmp.eq.s32.totalorder %s12, 0
    %p53 = por %p51, %p52
    %p54 = scmp.ne.s32.totalorder %s43, %s46
    %p55 = scmp.eq.s32.totalorder %s17, 2
    %p56 = por %p54, %p55
    %p57 = scmp.ne.s32.totalorder %s46, %s47
    %p58 = scmp.eq.s32.totalorder %s17, 0
    %p59 = por %p57, %p58
    %p60 = scmp.ne.s32.totalorder %s46, %s47
    %p61 = scmp.eq.s32.totalorder %s18, 2
    %p62 = por %p60, %p61
    %p64 = scmp.ne.s32.totalorder %s47, %s63
    %p65 = scmp.eq.s32.totalorder %s18, 0
    %p66 = por %p64, %p65
    %s67 = sadd.s32 %s12, 1
    %s68 = smul.u32 %s67, 2
    %s69 = sadd.s32 %s19, 1
    %s70 = smul.u32 %s69, 2
    %s71 = ssub.s32 %s68, %s70
    %p72 = scmp.eq.s32.totalorder %s71, 0
    %s74 = sadd.s32 %s73, 1
    %s75 = scalar_select %p72, %s73, %s74
    %p78 = pneg %p72
    %p79 = scmp.eq.s32.totalorder %s12, 2
    %p80 = por %p78, %p79
    %p81 = scmp.ne.s32.totalorder %s73, %s76
    %p82 = scmp.eq.s32.totalorder %s12, 0
    %p83 = por %p81, %p82
    %p84 = scmp.ne.s32.totalorder %s73, %s76
    %p85 = scmp.eq.s32.totalorder %s17, 2
    %p86 = por %p84, %p85
    %p87 = scmp.ne.s32.totalorder %s76, %s77
    %p88 = scmp.eq.s32.totalorder %s17, 0
    %p89 = por %p87, %p88
    %p90 = scmp.ne.s32.totalorder %s76, %s77
    %p91 = scmp.eq.s32.totalorder %s18, 2
    %p92 = por %p90, %p91
    %p94 = scmp.ne.s32.totalorder %s77, %s93
    %p95 = scmp.eq.s32.totalorder %s18, 0
    %p96 = por %p94, %p95
    %s97 = ssub.s32 %s12, %s19
    %p98 = scmp.eq.s32.totalorder %s97, 0
    %s100 = sadd.s32 %s99, 1
    %s101 = scalar_select %p98, %s99, %s100
    %p104 = pneg %p98
    %p105 = scmp.eq.s32.totalorder %s12, 2
    %p106 = por %p104, %p105
    %p107 = scmp.ne.s32.totalorder %s99, %s102
    %p108 = scmp.eq.s32.totalorder %s12, 0
    %p109 = por %p107, %p108
    %p110 = scmp.ne.s32.totalorder %s99, %s102
    %p111 = scmp.eq.s32.totalorder %s17, 2
    %p112 = por %p110, %p111
    %p113 = scmp.ne.s32.totalorder %s102, %s103
    %p114 = scmp.eq.s32.totalorder %s17, 0
    %p115 = por %p113, %p114
    %p116 = scmp.ne.s32.totalorder %s102, %s103
    %p117 = scmp.eq.s32.totalorder %s18, 2
    %p118 = por %p116, %p117
    %p120 = scmp.ne.s32.totalorder %s103, %s119
    %p121 = scmp.eq.s32.totalorder %s18, 0
    %p122 = por %p120, %p121
    %s123 = ssub.s32 %s12, %s19
    %p124 = scmp.eq.s32.totalorder %s123, 0
    %s126 = sadd.s32 %s125, 1
    %s127 = scalar_select %p124, %s125, %s126
    %p130 = pneg %p124
    %p131 = scmp.eq.s32.totalorder %s12, 2
    %p132 = por %p130, %p131
    %p133 = scmp.ne.s32.totalorder %s125, %s128
    %p134 = scmp.eq.s32.totalorder %s12, 0
    %p135 = por %p133, %p134
    %p136 = scmp.ne.s32.totalorder %s125, %s128
    %p137 = scmp.eq.s32.totalorder %s17, 2
    %p138 = por %p136, %p137
    %p139 = scmp.ne.s32.totalorder %s128, %s129
    %p140 = scmp.eq.s32.totalorder %s17, 0
    %p141 = por %p139, %p140
    %p142 = scmp.ne.s32.totalorder %s128, %s129
    %p143 = scmp.eq.s32.totalorder %s18, 2
    %p144 = por %p142, %p143
    %p146 = scmp.ne.s32.totalorder %s129, %s145
    %p147 = scmp.eq.s32.totalorder %s18, 0
    %p148 = por %p146, %p147
    %s149 = ssub.s32 %s12, %s19
    %p150 = scmp.eq.s32.totalorder %s149, 0
    %s152 = sadd.s32 %s151, 1
    %s153 = scalar_select %p150, %s151, %s152
    %p156 = pneg %p150
    %p157 = scmp.eq.s32.totalorder %s12, 2
    %p158 = por %p156, %p157
    %p159 = scmp.ne.s32.totalorder %s151, %s154
    %p160 = scmp.eq.s32.totalorder %s12, 0
    %p161 = por %p159, %p160
    %p162 = scmp.ne.s32.totalorder %s151, %s154
    %p163 = scmp.eq.s32.totalorder %s17, 2
    %p164 = por %p162, %p163
    %p165 = scmp.ne.s32.totalorder %s154, %s155
    %p166 = scmp.eq.s32.totalorder %s17, 0
    %p167 = por %p165, %p166
    %p168 = scmp.ne.s32.totalorder %s154, %s155
    %p169 = scmp.eq.s32.totalorder %s18, 2
    %p170 = por %p168, %p169
    %p172 = scmp.ne.s32.totalorder %s155, %s171
    %p173 = scmp.eq.s32.totalorder %s18, 0
    %p174 = por %p172, %p173
    %p175 = scmp.le.s32.totalorder 1, %s12
    %p176 = scmp.lt.s32.totalorder %s12, 4
    %p177 = pnand %p175, %p176
    %p178 = pneg %p177
    // Predicated region
    $region9: #{upsample_block.2} parent=5 // pred_check
      _
    $region10: #{upsample_block.2} parent=5 // pred_check_branch
      %180 = sbr.rel (%p177) target = $region12
    $region11: #{upsample_block.2} parent=5 // pred_region
      %s181 = ssub.s32 %s12, 1
      // Predicated region
      $region13: #{upsample_block.2} parent=11 // pred_check
        %p182 = pneg %p33
      $region14: #{upsample_block.2} parent=11 // pred_check_branch
        %184 = sbr.rel (%p182) target = $region16
      $region15: #{upsample_block.2} parent=11 // pred_region
        _
      $region16: #{upsample_block.2} parent=11 // pred_fallthru
        _
    $region12: #{upsample_block.2} parent=5 // pred_fallthru
      _
    %p185 = scmp.lt.s32.totalorder %s12, 3
    // Predicated region
    $region17: #{upsample_block.2} parent=5 // pred_check
      %p186 = pneg %p185
    $region18: #{upsample_block.2} parent=5 // pred_check_branch
      %188 = sbr.rel (%p186) target = $region20
    $region19: #{upsample_block.2} parent=5 // pred_region
      // Predicated region
      $region21: #{upsample_block.2} parent=19 // pred_check
        %p189 = pneg %p53
      $region22: #{upsample_block.2} parent=19 // pred_check_branch
        %191 = sbr.rel (%p189) target = $region24
      $region23: #{upsample_block.2} parent=19 // pred_region
        %s192 = smul.u32 2, %s12
        %s193 = ssub.s32 7, %s192
        %p194 = scmp.lt.s32.totalorder %s193, 2
        %s195 = scalar_select %p194, %s193, 2
        %s196 = smul.u32 64, %s195
        %p197 = scmp.lt.s32.totalorder %s192, 6
        %s198 = scalar_select %p197, %s192, 6
        %s199 = smul.addr %s198, 4
        %s200 = scalar_lea.vmem %s1, %s199
        %s201 = smul.u32 2, %s12
        %s202 = ssub.s32 7, %s201
        %p203 = scmp.lt.s32.totalorder %s202, 2
        %s204 = scalar_select %p203, %s202, 2
        %s205 = smul.u32 64, %s204
      $region24: #{upsample_block.2} parent=19 // pred_fallthru
        _
      // Predicated region
      $region25: #{upsample_block.2} parent=19 // pred_check
        %p206 = pneg %p83
      $region26: #{upsample_block.2} parent=19 // pred_check_branch
        %208 = sbr.rel (%p206) target = $region28
      $region27: #{upsample_block.2} parent=19 // pred_region
        %s209 = sadd.s32 %s12, 1
        %s210 = smul.u32 %s209, 2
        %p211 = scmp.lt.s32.totalorder %s210, 6
        %s212 = scalar_select %p211, %s210, 6
        %s213 = smul.addr %s212, 4
        %s214 = scalar_lea.vmem %s2, %s213
        %s215 = sadd.s32 %s12, 1
        %s216 = smul.u32 %s215, 2
      $region28: #{upsample_block.2} parent=19 // pred_fallthru
        _
      // Predicated region
      $region29: #{upsample_block.2} parent=19 // pred_check
        %p217 = pneg %p109
      $region30: #{upsample_block.2} parent=19 // pred_check_branch
        %219 = sbr.rel (%p217) target = $region32
      $region31: #{upsample_block.2} parent=19 // pred_region
        %s220 = smul.u32 2, %s12
        %p221 = scmp.lt.s32.totalorder %s220, 5
        %s222 = scalar_select %p221, %s220, 5
        %s223 = scalar_lea.vmem %s3, %s222
        %s224 = smul.u32 2, %s12
      $region32: #{upsample_block.2} parent=19 // pred_fallthru
        _
    $region20: #{upsample_block.2} parent=5 // pred_fallthru
      _
    %p225 = scmp.le.s32.totalorder 1, %s12
    %p226 = scmp.lt.s32.totalorder %s12, 4
    %p227 = pnand %p225, %p226
    %p228 = pneg %p227
    // Predicated region
    $region33: #{upsample_block.2} parent=5 // pred_check
      _
    $region34: #{upsample_block.2} parent=5 // pred_check_branch
      %230 = sbr.rel (%p227) target = $region36
    $region35: #{upsample_block.2} parent=5 // pred_region
      %s231 = ssub.s32 %s12, 1
      %p232 = pneg %p33
      %p233 = pneg %p30
      %s234 = smul.u32 2, %s17
      %s235 = ssub.s32 7, %s234
      %p236 = scmp.lt.s32.totalorder %s235, 2
      %s237 = scalar_select %p236, %s235, 2
      %s238 = smul.u32 64, %s237
      %p239 = scmp.lt.s32.totalorder %s234, 6
      %s240 = scalar_select %p239, %s234, 6
      %s241 = smul.addr %s240, 4
      %s242 = scalar_lea.vmem %s1, %s241
      %p243 = pneg %p59
      %p244 = pneg %p56
      %s245 = sadd.s32 %s17, 1
      %s246 = smul.u32 %s245, 2
      %p247 = scmp.lt.s32.totalorder %s246, 6
      %s248 = scalar_select %p247, %s246, 6
      %s249 = smul.addr %s248, 4
      %s250 = scalar_lea.vmem %s2, %s249
      %p251 = pneg %p89
      %p252 = pneg %p86
      %s253 = smul.u32 2, %s17
      %p254 = scmp.lt.s32.totalorder %s253, 5
      %s255 = scalar_select %p254, %s253, 5
      %s256 = scalar_lea.vmem %s3, %s255
      %p257 = pneg %p115
      %p258 = pneg %p112
      %p259 = pneg %p141
      %p260 = pneg %p138
      %p261 = scmp.lt.s32.totalorder %s17, 2
      %s262 = scalar_select %p261, %s17, 2
      %s263 = smul.addr %s262, 4
      %s264 = smul.addr %s263, 8
      %s265 = scalar_lea.vmem %s4, %s264
      %p266 = pneg %p167
      %p267 = pneg %p164
      %p268 = scmp.lt.s32.totalorder %s17, 2
      %s269 = scalar_select %p268, %s17, 2
      %s270 = smul.addr %s269, 4
      %s271 = smul.addr %s270, 8
      %s272 = scalar_lea.vmem %s5, %s271
      %s273 = smul.u32 2, %s17
      %s274 = ssub.s32 7, %s273
      %p275 = scmp.lt.s32.totalorder %s274, 2
      %s276 = scalar_select %p275, %s274, 2
      %s277 = smul.u32 64, %s276
      %p278 = scmp.lt.s32.totalorder %s273, 6
      %s279 = scalar_select %p278, %s273, 6
      %s280 = smul.addr %s279, 4
      %s281 = scalar_lea.vmem %s1, %s280
      %s282 = smul.u32 2, %s17
      %s283 = ssub.s32 7, %s282
      %p284 = scmp.lt.s32.totalorder %s283, 2
      %s285 = scalar_select %p284, %s283, 2
      %s286 = smul.u32 64, %s285
      %s287 = sadd.s32 %s17, 1
      %s288 = smul.u32 %s287, 2
      %p289 = scmp.lt.s32.totalorder %s288, 6
      %s290 = scalar_select %p289, %s288, 6
      %s291 = smul.addr %s290, 4
      %s292 = scalar_lea.vmem %s2, %s291
      %s293 = sadd.s32 %s17, 1
      %s294 = smul.u32 %s293, 2
      %s295 = smul.u32 2, %s17
      %p296 = scmp.lt.s32.totalorder %s295, 5
      %s297 = scalar_select %p296, %s295, 5
      %s298 = scalar_lea.vmem %s3, %s297
      %s299 = smul.u32 2, %s17
      %p300 = scmp.lt.s32.totalorder %s17, 2
      %s301 = scalar_select %p300, %s17, 2
      %s302 = smul.addr %s301, 4
      %s303 = smul.addr %s302, 8
      %s304 = scalar_lea.vmem %s4, %s303
      %p305 = scmp.lt.s32.totalorder %s17, 2
      %s306 = scalar_select %p305, %s17, 2
      %s307 = smul.addr %s306, 4
      %s308 = smul.addr %s307, 8
      %s309 = scalar_lea.vmem %s5, %s308
      %v310 = vld [vmem:[%s281] sm:$0xff]
      %v311 = vld [vmem:[%s292] sm:$0xf]
      %v313 = vcombine.high %v310, %v310
      %v316 = vrot.slane %v310, 4
      %v317 = vrot.slane %v313, 4
      %v318 = vrot.slane %v311, 4
      %319 = vrot.lane.b32.xlu0 %v316, 127
      %v320 = vpop.permute.xlu0 %319
      %321 = vrot.lane.b32.xlu0 %v317, 127
      %v322 = vpop.permute.xlu0 %321
      %323 = vrot.lane.b32.xlu0 %v318, 127
      %v324 = vpop.permute.xlu0 %323
      %vm325 = vcmask 1039360
      %v326 = vsel %vm325, %v320, %v322
      %v327 = vsel %vm325, %v322, %v324
      %330 = vrot.lane.b32.xlu0 %v310, 111
      %v331 = vpop.permute.xlu0 %330
      %332 = vrot.lane.b32.xlu0 %v313, 111
      %v333 = vpop.permute.xlu0 %332
      %334 = vrot.lane.b32.xlu0 %v311, 111
      %v335 = vpop.permute.xlu0 %334
      %vm336 = vcmask 908288
      %v337 = vsel %vm336, %v331, %v333
      %v338 = vsel %vm336, %v333, %v335
      %341 = vrot.lane.b32.xlu0 %v316, 110
      %v342 = vpop.permute.xlu0 %341
      %343 = vrot.lane.b32.xlu0 %v317, 110
      %v344 = vpop.permute.xlu0 %343
      %345 = vrot.lane.b32.xlu0 %v318, 110
      %v346 = vpop.permute.xlu0 %345
      %vm347 = vcmask 900096
      %v348 = vsel %vm347, %v342, %v344
      %v349 = vsel %vm347, %v344, %v346
      %vm352 = vcmask 1043456
      %v353 = vsel %vm352, %v310, %v326
      %v354 = vsel %vm352, %v313, %v327
      %v355 = vsel %vm352, %v337, %v348
      %v356 = vsel %vm352, %v338, %v349
      %v357 = vld [vmem:[%s0] sm:$0xff]
      %v358 = vld [vmem:[%s0 + $0x8] sm:$0xff]
      %v359 = vld [vmem:[%s0 + $0x10] sm:$0xff]
      %v360 = vld [vmem:[%s0 + $0x18] sm:$0xff]
      %vm361 = vcmask 130048
      %v363 = vsel %vm361, %v357, 0
      %v366 = vsel %vm361, %v358, 0
      %v369 = vsel %vm361, %v359, 0
      %v372 = vsel %vm361, %v360, 0
      %374 = vmatprep.subr.mxu0 %v354
      %375 = vmatpush1.msra.mxu0 %v353
      %376 = vmatprep.subr.mxu0 %v356
      %377 = vmatpush1.msra.mxu0 %v355
      %378 = vmatprep.subr.mxu0 0.0
      %379 = vmatpush1.msra.mxu0 0.0
      %380 = vmatprep.subr.mxu0 0.0
      %381 = vmatpush1.msra.mxu0 0.0
      %382 = vmatprep.subr.mxu0 0.0
      %383 = vmatpush1.msra.mxu0 0.0
      %384 = vmatprep.subr.mxu0 0.0
      %385 = vmatpush1.msra.mxu0 0.0
      %386 = vmatprep.subr.mxu0 0.0
      %387 = vmatpush1.msra.mxu0 0.0
      %388 = vmatprep.subr.mxu0 0.0
      %389 = vmatpush1.msra.mxu0 0.0
      %390 = vmatprep.subr.mxu0 0.0
      %391 = vmatpush1.msra.mxu0 0.0
      %392 = vmatprep.subr.mxu0 0.0
      %393 = vmatpush1.msra.mxu0 0.0
      %394 = vmatprep.subr.mxu0 0.0
      %395 = vmatpush1.msra.mxu0 0.0
      %396 = vmatprep.subr.mxu0 0.0
      %397 = vmatpush1.msra.mxu0 0.0
      %398 = vmatprep.subr.mxu0 0.0
      %399 = vmatpush1.msra.mxu0 0.0
      %400 = vmatprep.subr.mxu0 0.0
      %401 = vmatpush1.msra.mxu0 0.0
      %402 = vmatprep.subr.mxu0 0.0
      %403 = vmatpush1.msra.mxu0 0.0
      %404 = vmatprep.subr.mxu0 0.0
      %405 = vmatpush1.msra.mxu0 0.0
      %406 = vmatprep.subr.mxu0 0.0
      %407 = vmatpush1.msra.mxu0 0.0
      %408 = vmatprep.subr.mxu0 0.0
      %409 = vmatpush1.msra.mxu0 0.0
      %410 = vmatprep.subr.mxu0 0.0
      %411 = vmatpush1.msra.mxu0 0.0
      %412 = vmatprep.subr.mxu0 0.0
      %413 = vmatpush1.msra.mxu0 0.0
      %414 = vmatprep.subr.mxu0 0.0
      %415 = vmatpush1.msra.mxu0 0.0
      %416 = vmatprep.subr.mxu0 0.0
      %417 = vmatpush1.msra.mxu0 0.0
      %418 = vmatprep.subr.mxu0 0.0
      %419 = vmatpush1.msra.mxu0 0.0
      %420 = vmatprep.subr.mxu0 0.0
      %421 = vmatpush1.msra.mxu0 0.0
      %422 = vmatprep.subr.mxu0 0.0
      %423 = vmatpush1.msra.mxu0 0.0
      %424 = vmatprep.subr.mxu0 0.0
      %425 = vmatpush1.msra.mxu0 0.0
      %426 = vmatprep.subr.mxu0 0.0
      %427 = vmatpush1.msra.mxu0 0.0
      %428 = vmatprep.subr.mxu0 0.0
      %429 = vmatpush1.msra.mxu0 0.0
      %430 = vmatprep.subr.mxu0 0.0
      %431 = vmatpush1.msra.mxu0 0.0
      %432 = vmatprep.subr.mxu0 0.0
      %433 = vmatpush1.msra.mxu0 0.0
      %434 = vmatprep.subr.mxu0 0.0
      %435 = vmatpush1.msra.mxu0 0.0
      %436 = vmatprep.subr.mxu0 0.0
      %437 = vmatpush1.msra.mxu0 0.0
      %438 = vmatprep.mubr.f32.mxu0 0.0
      %439 = vmatmul.mubr.f32.gmra.mrb[0].mxu0 %v363
      %v440 = vpop.f32.mrb[0].mxu0
      %v441 = vadd.f32 0.0, %v440
      %v442 = vpop.f32.mrb[0].mxu0
      %v443 = vadd.f32 0.0, %v442
      %444 = vmatprep.mubr.f32.mxu0 0.0
      %445 = vmatmul.mubr.f32.gmra.mrb[0].mxu0 %v366
      %v446 = vpop.f32.mrb[0].mxu0
      %v447 = vadd.f32 0.0, %v446
      %v448 = vpop.f32.mrb[0].mxu0
      %v449 = vadd.f32 0.0, %v448
      %450 = vmatprep.mubr.f32.mxu0 0.0
      %451 = vmatmul.mubr.f32.gmra.mrb[0].mxu0 %v369
      %v452 = vpop.f32.mrb[0].mxu0
      %v453 = vadd.f32 0.0, %v452
      %v454 = vpop.f32.mrb[0].mxu0
      %v455 = vadd.f32 0.0, %v454
      %456 = vmatprep.mubr.f32.mxu0 0.0
      %457 = vmatmul.mubr.f32.gmra.mrb[0].mxu0 %v372
      %v458 = vpop.f32.mrb[0].mxu0
      %v459 = vadd.f32 0.0, %v458
      %v460 = vpop.f32.mrb[0].mxu0
      %v461 = vadd.f32 0.0, %v460
      %462 = vdwg.mxu0
      %v463 = vld [vmem:[%s298] sm:$0x3]
      %v465 = vlaneseq
      %v466 = vshrl.u32 %v465, 7
      %v467 = vsub.s32 0, %v466
      %v468 = vrot.slane %v463, %v467
      %v469 = vlaneseq
      %v470 = vshrl.u32 %v469, 7
      %v471 = vsub.s32 1, %v470
      %v472 = vrot.slane %v463, %v471
      %vm475 = vcmask 1040384
      %v476 = vsel %vm475, %v468, 0.0
      %v477 = vsel %vm475, %v472, 0.0
      %v478 = vadd.f32 %v476, %v477
      %479 = vadd.xlane.f32.xlu0 %v478
      %v480 = vpop.xlane.xlu0 %479
      %v481 = vmul.f32 %v441, %v468
      %v482 = vmul.f32 %v443, %v472
      %v483 = vmul.f32 %v447, %v468
      %v484 = vmul.f32 %v449, %v472
      %v485 = vmul.f32 %v453, %v468
      %v486 = vmul.f32 %v455, %v472
      %v487 = vmul.f32 %v459, %v468
      %v488 = vmul.f32 %v461, %v472
      %v489 = vadd.f32 %v481, %v482
      %490 = vadd.xlane.f32.xlu0 %v489
      %v491 = vpop.xlane.xlu0 %490
      %v492 = vadd.f32 %v483, %v484
      %493 = vadd.xlane.f32.xlu0 %v492
      %v494 = vpop.xlane.xlu0 %493
      %v495 = vadd.f32 %v485, %v486
      %496 = vadd.xlane.f32.xlu0 %v495
      %v497 = vpop.xlane.xlu0 %496
      %v498 = vadd.f32 %v487, %v488
      %499 = vadd.xlane.f32.xlu0 %v498
      %v500 = vpop.xlane.xlu0 %499
      %v501 = vmax.f32 %v480, 1.0
      %v502 = vlaneseq
      %v503 = vshrl.u32 %v502, 7
      %v504 = vsub.s32 0, %v503
      %v505 = vrot.slane %v501, %v504
      %v506 = vrcp.pop %v505
      %v507 = vmul.f32 %v491, %v506
      %v508 = vmul.f32 %v494, %v506
      %v509 = vmul.f32 %v497, %v506
      %v510 = vmul.f32 %v500, %v506
      %v511 = vsub.f32 %v441, %v507
      %v512 = vsub.f32 %v443, %v507
      %v513 = vsub.f32 %v447, %v508
      %v514 = vsub.f32 %v449, %v508
      %v515 = vsub.f32 %v453, %v509
      %v516 = vsub.f32 %v455, %v509
      %v517 = vsub.f32 %v459, %v510
      %v518 = vsub.f32 %v461, %v510
      %v519 = vmul.f32 %v511, %v468
      %v520 = vmul.f32 %v512, %v472
      %v521 = vmul.f32 %v513, %v468
      %v522 = vmul.f32 %v514, %v472
      %v523 = vmul.f32 %v515, %v468
      %v524 = vmul.f32 %v516, %v472
      %v525 = vmul.f32 %v517, %v468
      %v526 = vmul.f32 %v518, %v472
      %vm527 = vcmask 7168
      %528 = vst.msk [vmem:[%s304] sm:$0xff] %vm527, %v507
      %529 = vst.msk [vmem:[%s304 + $0x8] sm:$0xff] %vm527, %v508
      %530 = vst.msk [vmem:[%s304 + $0x10] sm:$0xff] %vm527, %v509
      %531 = vst.msk [vmem:[%s304 + $0x18] sm:$0xff] %vm527, %v510
      %v532 = vmul.f32 %v519, %v519
      %v533 = vmul.f32 %v520, %v520
      %v534 = vmul.f32 %v521, %v521
      %v535 = vmul.f32 %v522, %v522
      %v536 = vmul.f32 %v523, %v523
      %v537 = vmul.f32 %v524, %v524
      %v538 = vmul.f32 %v525, %v525
      %v539 = vmul.f32 %v526, %v526
      %v540 = vadd.f32 %v532, %v533
      %541 = vadd.xlane.f32.xlu0 %v540
      %v542 = vpop.xlane.xlu0 %541
      %v543 = vadd.f32 %v534, %v535
      %544 = vadd.xlane.f32.xlu0 %v543
      %v545 = vpop.xlane.xlu0 %544
      %v546 = vadd.f32 %v536, %v537
      %547 = vadd.xlane.f32.xlu0 %v546
      %v548 = vpop.xlane.xlu0 %547
      %v549 = vadd.f32 %v538, %v539
      %550 = vadd.xlane.f32.xlu0 %v549
      %v551 = vpop.xlane.xlu0 %550
      %552 = vst.msk [vmem:[%s309] sm:$0xff] %vm527, %v542
      %553 = vst.msk [vmem:[%s309 + $0x8] sm:$0xff] %vm527, %v545
      %554 = vst.msk [vmem:[%s309 + $0x10] sm:$0xff] %vm527, %v548
      %555 = vst.msk [vmem:[%s309 + $0x18] sm:$0xff] %vm527, %v551
      %p556 = scmp.lt.s32.totalorder %s17, 2
      %s557 = scalar_select %p556, %s17, 2
      %s558 = smul.addr %s557, 4
      %s559 = smul.addr %s558, 8
      %s560 = scalar_lea.vmem %s4, %s559
      %p561 = scmp.lt.s32.totalorder %s17, 2
      %s562 = scalar_select %p561, %s17, 2
      %s563 = smul.addr %s562, 4
      %s564 = smul.addr %s563, 8
      %s565 = scalar_lea.vmem %s5, %s564
      // Predicated region
      $region37: #{upsample_block.2} parent=35 // pred_check
        %p566 = pneg %p138
      $region38: #{upsample_block.2} parent=35 // pred_check_branch
        %568 = sbr.rel (%p566) target = $region40
      $region39: #{upsample_block.2} parent=35 // pred_region
        _
      $region40: #{upsample_block.2} parent=35 // pred_fallthru
        _
      // Predicated region
      $region41: #{upsample_block.2} parent=35 // pred_check
        %p569 = pneg %p164
      $region42: #{upsample_block.2} parent=35 // pred_check_branch
        %571 = sbr.rel (%p569) target = $region44
      $region43: #{upsample_block.2} parent=35 // pred_region
        _
      $region44: #{upsample_block.2} parent=35 // pred_fallthru
        _
    $region36: #{upsample_block.2} parent=5 // pred_fallthru
      _
    %p572 = scmp.le.s32.totalorder 2, %s12
    // Predicated region
    $region45: #{upsample_block.2} parent=5 // pred_check
      %p573 = pneg %p572
    $region46: #{upsample_block.2} parent=5 // pred_check_branch
      %575 = sbr.rel (%p573) target = $region48
    $region47: #{upsample_block.2} parent=5 // pred_region
      %s576 = ssub.s32 %s12, 2
      // Predicated region
      $region49: #{upsample_block.2} parent=47 // pred_check
        %p577 = pneg %p144
      $region50: #{upsample_block.2} parent=47 // pred_check_branch
        %579 = sbr.rel (%p577) target = $region52
      $region51: #{upsample_block.2} parent=47 // pred_region
        %p580 = scmp.lt.s32.totalorder %s18, 2
        %s581 = scalar_select %p580, %s18, 2
        %s582 = smul.addr %s581, 4
        %s583 = smul.addr %s582, 8
        %s584 = scalar_lea.vmem %s4, %s583
      $region52: #{upsample_block.2} parent=47 // pred_fallthru
        _
      // Predicated region
      $region53: #{upsample_block.2} parent=47 // pred_check
        %p585 = pneg %p170
      $region54: #{upsample_block.2} parent=47 // pred_check_branch
        %587 = sbr.rel (%p585) target = $region56
      $region55: #{upsample_block.2} parent=47 // pred_region
        %p588 = scmp.lt.s32.totalorder %s18, 2
        %s589 = scalar_select %p588, %s18, 2
        %s590 = smul.addr %s589, 4
        %s591 = smul.addr %s590, 8
        %s592 = scalar_lea.vmem %s5, %s591
      $region56: #{upsample_block.2} parent=47 // pred_fallthru
        _
    $region48: #{upsample_block.2} parent=5 // pred_fallthru
      _
  $region6: #{upsample_block.2} parent=0 // loop_footer
    %s16 = sadd.s32 1, %s12
  $region7: #{upsample_block.2} parent=0 // loop_footer_branch
    %11 = sbr.rel target = $region3
  $region8: #{upsample_block.2} parent=0 // loop_exit
    _

// kernel: upsample_block.3
$region0: #{upsample_block.3}
  #allocation0 [shape = 'u32[]', space=smem, size = 0x4, offset = 0x4, fixed_abs, tag = 'smem constant byte address 0x4 - core index']
  #allocation1 [shape = 'u32[144,128]{1,0:T(1,128)}', space=vmem, size = 0x12000, scoped, tag = 'internal scratch']
  %s0 = inlined_call_operand.vmem [shape: f32[32,16], index: 0, kind: input, shape index: {}]
  %s1 = inlined_call_operand.vmem [shape: f32[4,896], index: 1, kind: input, shape index: {}, may-alias: {1,2}]
  %s2 = inlined_call_operand.vmem [shape: f32[4,896], index: 2, kind: input, shape index: {}, may-alias: {1,2}]
  %s3 = inlined_call_operand.vmem [shape: f32[32,1], index: 3, kind: input, shape index: {}]
  %s4 = inlined_call_operand.vmem [shape: f32[32,1], index: 4, kind: input, shape index: {}]
  %s5 = inlined_call_operand.vmem [shape: f32[32,768], index: 5, kind: output, shape index: {}]
  %s6 = sld [smem:[#allocation0]]
  $region72: #{upsample_block.3} parent=0
    _
  %s8 = ssub.s32 1, %s6
  %s9 = scalar_select 0, %s8, %s6
  $region1: #{upsample_block.3} parent=0
    #allocation2 [shape = 'u8[65536]{0}', space=vmem, size = 0x10000, scoped, tag = 'output window, operand 0']
    loop: start=0, step=1, limit=5
    $region2: #{upsample_block.3} parent=1 // loop_pre_header
      _
    $region3: #{upsample_block.3} parent=1 // loop_header
      %s11 = sphi 0, %s15
      %p12 = scmp.ge.s32.totalorder %s11, 5
      %s19 = sphi 0, %s19
      %s21 = sphi 0, %s19
      %s22 = sphi 0, %s21
      %s36 = sphi 0, %s22
      %s42 = sphi 0, %s44
      %s45 = sphi 0, %s42
      %s46 = sphi 0, %s45
      %s62 = sphi 0, %s46
      %s72 = sphi 0, %s74
      %s75 = sphi 0, %s72
      %s76 = sphi 0, %s75
      %s92 = sphi 0, %s76
      %s96 = sphi 0, %s96
      %s98 = sphi 0, %s96
      %s99 = sphi 0, %s98
      %s113 = sphi 0, %s99
      %s117 = sphi 0, %s117
      %s119 = sphi 0, %s117
      %s120 = sphi 0, %s119
      %s134 = sphi 0, %s120
      %s140 = sphi 0, %s142
      %s143 = sphi 0, %s140
      %s144 = sphi 0, %s143
      %s160 = sphi 0, %s144
    $region4: #{upsample_block.3} parent=1 // loop_header_branch
      %14 = sbr.rel (%p12) target = $region8
    $region5: #{upsample_block.3} parent=1 // loop_body
      %s16 = ssub.s32 %s11, 1
      %s17 = ssub.s32 %s11, 2
      %s18 = sadd.s32 %s11, 1
      %s20 = sadd.s32 %s19, 1
      %p23 = scmp.eq.s32.totalorder %s11, 2
      %p24 = scmp.ne.s32.totalorder %s19, %s21
      %p25 = scmp.eq.s32.totalorder %s11, 0
      %p26 = por %p24, %p25
      %p27 = scmp.ne.s32.totalorder %s19, %s21
      %p28 = scmp.eq.s32.totalorder %s16, 2
      %p29 = por %p27, %p28
      %p30 = scmp.ne.s32.totalorder %s21, %s22
      %p31 = scmp.eq.s32.totalorder %s16, 0
      %p32 = por %p30, %p31
      %p33 = scmp.ne.s32.totalorder %s21, %s22
      %p34 = scmp.eq.s32.totalorder %s17, 2
      %p35 = por %p33, %p34
      %p37 = scmp.ne.s32.totalorder %s22, %s36
      %p38 = scmp.eq.s32.totalorder %s17, 0
      %p39 = por %p37, %p38
      %s40 = ssub.s32 %s11, %s18
      %p41 = scmp.eq.s32.totalorder %s40, 0
      %s43 = sadd.s32 %s42, 1
      %s44 = scalar_select %p41, %s42, %s43
      %p47 = pneg %p41
      %p48 = scmp.eq.s32.totalorder %s11, 2
      %p49 = por %p47, %p48
      %p50 = scmp.ne.s32.totalorder %s42, %s45
      %p51 = scmp.eq.s32.totalorder %s11, 0
      %p52 = por %p50, %p51
      %p53 = scmp.ne.s32.totalorder %s42, %s45
      %p54 = scmp.eq.s32.totalorder %s16, 2
      %p55 = por %p53, %p54
      %p56 = scmp.ne.s32.totalorder %s45, %s46
      %p57 = scmp.eq.s32.totalorder %s16, 0
      %p58 = por %p56, %p57
      %p59 = scmp.ne.s32.totalorder %s45, %s46
      %p60 = scmp.eq.s32.totalorder %s17, 2
      %p61 = por %p59, %p60
      %p63 = scmp.ne.s32.totalorder %s46, %s62
      %p64 = scmp.eq.s32.totalorder %s17, 0
      %p65 = por %p63, %p64
      %s66 = sadd.s32 %s11, 1
      %s67 = smul.u32 %s66, 2
      %s68 = sadd.s32 %s18, 1
      %s69 = smul.u32 %s68, 2
      %s70 = ssub.s32 %s67, %s69
      %p71 = scmp.eq.s32.totalorder %s70, 0
      %s73 = sadd.s32 %s72, 1
      %s74 = scalar_select %p71, %s72, %s73
      %p77 = pneg %p71
      %p78 = scmp.eq.s32.totalorder %s11, 2
      %p79 = por %p77, %p78
      %p80 = scmp.ne.s32.totalorder %s72, %s75
      %p81 = scmp.eq.s32.totalorder %s11, 0
      %p82 = por %p80, %p81
      %p83 = scmp.ne.s32.totalorder %s72, %s75
      %p84 = scmp.eq.s32.totalorder %s16, 2
      %p85 = por %p83, %p84
      %p86 = scmp.ne.s32.totalorder %s75, %s76
      %p87 = scmp.eq.s32.totalorder %s16, 0
      %p88 = por %p86, %p87
      %p89 = scmp.ne.s32.totalorder %s75, %s76
      %p90 = scmp.eq.s32.totalorder %s17, 2
      %p91 = por %p89, %p90
      %p93 = scmp.ne.s32.totalorder %s76, %s92
      %p94 = scmp.eq.s32.totalorder %s17, 0
      %p95 = por %p93, %p94
      %s97 = sadd.s32 %s96, 1
      %p100 = scmp.eq.s32.totalorder %s11, 2
      %p101 = scmp.ne.s32.totalorder %s96, %s98
      %p102 = scmp.eq.s32.totalorder %s11, 0
      %p103 = por %p101, %p102
      %p104 = scmp.ne.s32.totalorder %s96, %s98
      %p105 = scmp.eq.s32.totalorder %s16, 2
      %p106 = por %p104, %p105
      %p107 = scmp.ne.s32.totalorder %s98, %s99
      %p108 = scmp.eq.s32.totalorder %s16, 0
      %p109 = por %p107, %p108
      %p110 = scmp.ne.s32.totalorder %s98, %s99
      %p111 = scmp.eq.s32.totalorder %s17, 2
      %p112 = por %p110, %p111
      %p114 = scmp.ne.s32.totalorder %s99, %s113
      %p115 = scmp.eq.s32.totalorder %s17, 0
      %p116 = por %p114, %p115
      %s118 = sadd.s32 %s117, 1
      %p121 = scmp.eq.s32.totalorder %s11, 2
      %p122 = scmp.ne.s32.totalorder %s117, %s119
      %p123 = scmp.eq.s32.totalorder %s11, 0
      %p124 = por %p122, %p123
      %p125 = scmp.ne.s32.totalorder %s117, %s119
      %p126 = scmp.eq.s32.totalorder %s16, 2
      %p127 = por %p125, %p126
      %p128 = scmp.ne.s32.totalorder %s119, %s120
      %p129 = scmp.eq.s32.totalorder %s16, 0
      %p130 = por %p128, %p129
      %p131 = scmp.ne.s32.totalorder %s119, %s120
      %p132 = scmp.eq.s32.totalorder %s17, 2
      %p133 = por %p131, %p132
      %p135 = scmp.ne.s32.totalorder %s120, %s134
      %p136 = scmp.eq.s32.totalorder %s17, 0
      %p137 = por %p135, %p136
      %s138 = ssub.s32 %s11, %s18
      %p139 = scmp.eq.s32.totalorder %s138, 0
      %s141 = sadd.s32 %s140, 1
      %s142 = scalar_select %p139, %s140, %s141
      %p145 = pneg %p139
      %p146 = scmp.eq.s32.totalorder %s11, 2
      %p147 = por %p145, %p146
      %p148 = scmp.ne.s32.totalorder %s140, %s143
      %p149 = scmp.eq.s32.totalorder %s11, 0
      %p150 = por %p148, %p149
      %p151 = scmp.ne.s32.totalorder %s140, %s143
      %p152 = scmp.eq.s32.totalorder %s16, 2
      %p153 = por %p151, %p152
      %p154 = scmp.ne.s32.totalorder %s143, %s144
      %p155 = scmp.eq.s32.totalorder %s16, 0
      %p156 = por %p154, %p155
      %p157 = scmp.ne.s32.totalorder %s143, %s144
      %p158 = scmp.eq.s32.totalorder %s17, 2
      %p159 = por %p157, %p158
      %p161 = scmp.ne.s32.totalorder %s144, %s160
      %p162 = scmp.eq.s32.totalorder %s17, 0
      %p163 = por %p161, %p162
      %p164 = scmp.le.s32.totalorder 1, %s11
      %p165 = scmp.lt.s32.totalorder %s11, 4
      %p166 = pnand %p164, %p165
      %p167 = pneg %p166
      // Predicated region
      $region9: #{upsample_block.3} parent=5 // pred_check
        _
      $region10: #{upsample_block.3} parent=5 // pred_check_branch
        %169 = sbr.rel (%p166) target = $region12
      $region11: #{upsample_block.3} parent=5 // pred_region
        %s170 = ssub.s32 %s11, 1
        // Predicated region
        $region13: #{upsample_block.3} parent=11 // pred_check
          %p171 = pneg %p32
        $region14: #{upsample_block.3} parent=11 // pred_check_branch
          %173 = sbr.rel (%p171) target = $region16
        $region15: #{upsample_block.3} parent=11 // pred_region
          _
        $region16: #{upsample_block.3} parent=11 // pred_fallthru
          _
        // Predicated region
        $region17: #{upsample_block.3} parent=11 // pred_check
          %p174 = pneg %p109
        $region18: #{upsample_block.3} parent=11 // pred_check_branch
          %176 = sbr.rel (%p174) target = $region20
        $region19: #{upsample_block.3} parent=11 // pred_region
          _
        $region20: #{upsample_block.3} parent=11 // pred_fallthru
          _
        // Predicated region
        $region21: #{upsample_block.3} parent=11 // pred_check
          %p177 = pneg %p130
        $region22: #{upsample_block.3} parent=11 // pred_check_branch
          %179 = sbr.rel (%p177) target = $region24
        $region23: #{upsample_block.3} parent=11 // pred_region
          _
        $region24: #{upsample_block.3} parent=11 // pred_fallthru
          _
      $region12: #{upsample_block.3} parent=5 // pred_fallthru
        _
      %p180 = scmp.lt.s32.totalorder %s11, 3
      // Predicated region
      $region25: #{upsample_block.3} parent=5 // pred_check
        %p181 = pneg %p180
      $region26: #{upsample_block.3} parent=5 // pred_check_branch
        %183 = sbr.rel (%p181) target = $region28
      $region27: #{upsample_block.3} parent=5 // pred_region
        // Predicated region
        $region29: #{upsample_block.3} parent=27 // pred_check
          %p184 = pneg %p52
        $region30: #{upsample_block.3} parent=27 // pred_check_branch
          %186 = sbr.rel (%p184) target = $region32
        $region31: #{upsample_block.3} parent=27 // pred_region
          %s187 = smul.u32 2, %s11
          %s188 = ssub.s32 7, %s187
          %p189 = scmp.lt.s32.totalorder %s188, 2
          %s190 = scalar_select %p189, %s188, 2
          %s191 = smul.u32 64, %s190
          %p192 = scmp.lt.s32.totalorder %s187, 6
          %s193 = scalar_select %p192, %s187, 6
          %s194 = smul.addr %s193, 4
          %s195 = scalar_lea.vmem %s1, %s194
          %s196 = smul.u32 2, %s11
          %s197 = ssub.s32 7, %s196
          %p198 = scmp.lt.s32.totalorder %s197, 2
          %s199 = scalar_select %p198, %s197, 2
          %s200 = smul.u32 64, %s199
        $region32: #{upsample_block.3} parent=27 // pred_fallthru
          _
        // Predicated region
        $region33: #{upsample_block.3} parent=27 // pred_check
          %p201 = pneg %p82
        $region34: #{upsample_block.3} parent=27 // pred_check_branch
          %203 = sbr.rel (%p201) target = $region36
        $region35: #{upsample_block.3} parent=27 // pred_region
          %s204 = sadd.s32 %s11, 1
          %s205 = smul.u32 %s204, 2
          %p206 = scmp.lt.s32.totalorder %s205, 6
          %s207 = scalar_select %p206, %s205, 6
          %s208 = smul.addr %s207, 4
          %s209 = scalar_lea.vmem %s2, %s208
          %s210 = sadd.s32 %s11, 1
          %s211 = smul.u32 %s210, 2
        $region36: #{upsample_block.3} parent=27 // pred_fallthru
          _
      $region28: #{upsample_block.3} parent=5 // pred_fallthru
        _
      %p212 = scmp.le.s32.totalorder 1, %s11
      %p213 = scmp.lt.s32.totalorder %s11, 4
      %p214 = pnand %p212, %p213
      %p215 = pneg %p214
      // Predicated region
      $region37: #{upsample_block.3} parent=5 // pred_check
        _
      $region38: #{upsample_block.3} parent=5 // pred_check_branch
        %217 = sbr.rel (%p214) target = $region40
      $region39: #{upsample_block.3} parent=5 // pred_region
        %s218 = ssub.s32 %s11, 1
        %p219 = pneg %p32
        %p220 = pneg %p29
        %s221 = smul.u32 2, %s16
        %s222 = ssub.s32 7, %s221
        %p223 = scmp.lt.s32.totalorder %s222, 2
        %s224 = scalar_select %p223, %s222, 2
        %s225 = smul.u32 64, %s224
        %p226 = scmp.lt.s32.totalorder %s221, 6
        %s227 = scalar_select %p226, %s221, 6
        %s228 = smul.addr %s227, 4
        %s229 = scalar_lea.vmem %s1, %s228
        %p230 = pneg %p58
        %p231 = pneg %p55
        %s232 = sadd.s32 %s16, 1
        %s233 = smul.u32 %s232, 2
        %p234 = scmp.lt.s32.totalorder %s233, 6
        %s235 = scalar_select %p234, %s233, 6
        %s236 = smul.addr %s235, 4
        %s237 = scalar_lea.vmem %s2, %s236
        %p238 = pneg %p88
        %p239 = pneg %p85
        %p240 = pneg %p109
        %p241 = pneg %p106
        %p242 = pneg %p130
        %p243 = pneg %p127
        %p244 = pneg %p156
        %p245 = pneg %p153
        %s246 = sand.u32 %s143, 1
        %s247 = sand.u32 %s143, 1
        %s248 = smul.addr %s247, 64
        %s249 = scalar_lea.vmem [#allocation2], %s248
        %s250 = smul.u32 2, %s16
        %s251 = ssub.s32 7, %s250
        %p252 = scmp.lt.s32.totalorder %s251, 2
        %s253 = scalar_select %p252, %s251, 2
        %s254 = smul.u32 64, %s253
        %p255 = scmp.lt.s32.totalorder %s250, 6
        %s256 = scalar_select %p255, %s250, 6
        %s257 = smul.addr %s256, 4
        %s258 = scalar_lea.vmem %s1, %s257
        %s259 = smul.u32 2, %s16
        %s260 = ssub.s32 7, %s259
        %p261 = scmp.lt.s32.totalorder %s260, 2
        %s262 = scalar_select %p261, %s260, 2
        %s263 = smul.u32 64, %s262
        %s264 = sadd.s32 %s16, 1
        %s265 = smul.u32 %s264, 2
        %p266 = scmp.lt.s32.totalorder %s265, 6
        %s267 = scalar_select %p266, %s265, 6
        %s268 = smul.addr %s267, 4
        %s269 = scalar_lea.vmem %s2, %s268
        %s270 = sadd.s32 %s16, 1
        %s271 = smul.u32 %s270, 2
        %s272 = smul.u32 2, %s16
        %v273 = vld [vmem:[%s258] sm:$0xff]
        %v274 = vld [vmem:[%s269] sm:$0xf]
        %v276 = vcombine.high %v273, %v273
        %v279 = vrot.slane %v273, 4
        %v280 = vrot.slane %v276, 4
        %v281 = vrot.slane %v274, 4
        %282 = vrot.lane.b32.xlu0 %v279, 127
        %v283 = vpop.permute.xlu0 %282
        %284 = vrot.lane.b32.xlu0 %v280, 127
        %v285 = vpop.permute.xlu0 %284
        %286 = vrot.lane.b32.xlu0 %v281, 127
        %v287 = vpop.permute.xlu0 %286
        %vm288 = vcmask 1039360
        %v289 = vsel %vm288, %v283, %v285
        %v290 = vsel %vm288, %v285, %v287
        %293 = vrot.lane.b32.xlu0 %v273, 111
        %v294 = vpop.permute.xlu0 %293
        %295 = vrot.lane.b32.xlu0 %v276, 111
        %v296 = vpop.permute.xlu0 %295
        %297 = vrot.lane.b32.xlu0 %v274, 111
        %v298 = vpop.permute.xlu0 %297
        %vm299 = vcmask 908288
        %v300 = vsel %vm299, %v294, %v296
        %v301 = vsel %vm299, %v296, %v298
        %304 = vrot.lane.b32.xlu0 %v279, 110
        %v305 = vpop.permute.xlu0 %304
        %306 = vrot.lane.b32.xlu0 %v280, 110
        %v307 = vpop.permute.xlu0 %306
        %308 = vrot.lane.b32.xlu0 %v281, 110
        %v309 = vpop.permute.xlu0 %308
        %vm310 = vcmask 900096
        %v311 = vsel %vm310, %v305, %v307
        %v312 = vsel %vm310, %v307, %v309
        %vm315 = vcmask 1043456
        %v316 = vsel %vm315, %v273, %v289
        %v317 = vsel %vm315, %v276, %v290
        %v318 = vsel %vm315, %v300, %v311
        %v319 = vsel %vm315, %v301, %v312
        %v320 = vld [vmem:[%s0] sm:$0xff]
        %v321 = vld [vmem:[%s0 + $0x8] sm:$0xff]
        %v322 = vld [vmem:[%s0 + $0x10] sm:$0xff]
        %v323 = vld [vmem:[%s0 + $0x18] sm:$0xff]
        %vm324 = vcmask 130048
        %v326 = vsel %vm324, %v320, 0
        %v329 = vsel %vm324, %v321, 0
        %v332 = vsel %vm324, %v322, 0
        %v335 = vsel %vm324, %v323, 0
        %337 = vmatprep.subr.mxu0 %v317
        %338 = vmatpush1.msra.mxu0 %v316
        %339 = vmatprep.subr.mxu0 %v319
        %340 = vmatpush1.msra.mxu0 %v318
        %341 = vmatprep.subr.mxu0 0.0
        %342 = vmatpush1.msra.mxu0 0.0
        %343 = vmatprep.subr.mxu0 0.0
        %344 = vmatpush1.msra.mxu0 0.0
        %345 = vmatprep.subr.mxu0 0.0
        %346 = vmatpush1.msra.mxu0 0.0
        %347 = vmatprep.subr.mxu0 0.0
        %348 = vmatpush1.msra.mxu0 0.0
        %349 = vmatprep.subr.mxu0 0.0
        %350 = vmatpush1.msra.mxu0 0.0
        %351 = vmatprep.subr.mxu0 0.0
        %352 = vmatpush1.msra.mxu0 0.0
        %353 = vmatprep.subr.mxu0 0.0
        %354 = vmatpush1.msra.mxu0 0.0
        %355 = vmatprep.subr.mxu0 0.0
        %356 = vmatpush1.msra.mxu0 0.0
        %357 = vmatprep.subr.mxu0 0.0
        %358 = vmatpush1.msra.mxu0 0.0
        %359 = vmatprep.subr.mxu0 0.0
        %360 = vmatpush1.msra.mxu0 0.0
        %361 = vmatprep.subr.mxu0 0.0
        %362 = vmatpush1.msra.mxu0 0.0
        %363 = vmatprep.subr.mxu0 0.0
        %364 = vmatpush1.msra.mxu0 0.0
        %365 = vmatprep.subr.mxu0 0.0
        %366 = vmatpush1.msra.mxu0 0.0
        %367 = vmatprep.subr.mxu0 0.0
        %368 = vmatpush1.msra.mxu0 0.0
        %369 = vmatprep.subr.mxu0 0.0
        %370 = vmatpush1.msra.mxu0 0.0
        %371 = vmatprep.subr.mxu0 0.0
        %372 = vmatpush1.msra.mxu0 0.0
        %373 = vmatprep.subr.mxu0 0.0
        %374 = vmatpush1.msra.mxu0 0.0
        %375 = vmatprep.subr.mxu0 0.0
        %376 = vmatpush1.msra.mxu0 0.0
        %377 = vmatprep.subr.mxu0 0.0
        %378 = vmatpush1.msra.mxu0 0.0
        %379 = vmatprep.subr.mxu0 0.0
        %380 = vmatpush1.msra.mxu0 0.0
        %381 = vmatprep.subr.mxu0 0.0
        %382 = vmatpush1.msra.mxu0 0.0
        %383 = vmatprep.subr.mxu0 0.0
        %384 = vmatpush1.msra.mxu0 0.0
        %385 = vmatprep.subr.mxu0 0.0
        %386 = vmatpush1.msra.mxu0 0.0
        %387 = vmatprep.subr.mxu0 0.0
        %388 = vmatpush1.msra.mxu0 0.0
        %389 = vmatprep.subr.mxu0 0.0
        %390 = vmatpush1.msra.mxu0 0.0
        %391 = vmatprep.subr.mxu0 0.0
        %392 = vmatpush1.msra.mxu0 0.0
        %393 = vmatprep.subr.mxu0 0.0
        %394 = vmatpush1.msra.mxu0 0.0
        %395 = vmatprep.subr.mxu0 0.0
        %396 = vmatpush1.msra.mxu0 0.0
        %397 = vmatprep.subr.mxu0 0.0
        %398 = vmatpush1.msra.mxu0 0.0
        %399 = vmatprep.subr.mxu0 0.0
        %400 = vmatpush1.msra.mxu0 0.0
        %401 = vmatprep.mubr.f32.mxu0 0.0
        %402 = vmatmul.mubr.f32.gmra.mrb[0].mxu0 %v326
        %v403 = vpop.f32.mrb[0].mxu0
        %v404 = vadd.f32 0.0, %v403
        %v405 = vpop.f32.mrb[0].mxu0
        %v406 = vadd.f32 0.0, %v405
        %407 = vmatprep.mubr.f32.mxu0 0.0
        %408 = vmatmul.mubr.f32.gmra.mrb[0].mxu0 %v329
        %v409 = vpop.f32.mrb[0].mxu0
        %v410 = vadd.f32 0.0, %v409
        %v411 = vpop.f32.mrb[0].mxu0
        %v412 = vadd.f32 0.0, %v411
        %413 = vmatprep.mubr.f32.mxu0 0.0
        %414 = vmatmul.mubr.f32.gmra.mrb[0].mxu0 %v332
        %v415 = vpop.f32.mrb[0].mxu0
        %v416 = vadd.f32 0.0, %v415
        %v417 = vpop.f32.mrb[0].mxu0
        %v418 = vadd.f32 0.0, %v417
        %419 = vmatprep.mubr.f32.mxu0 0.0
        %420 = vmatmul.mubr.f32.gmra.mrb[0].mxu0 %v335
        %v421 = vpop.f32.mrb[0].mxu0
        %v422 = vadd.f32 0.0, %v421
        %v423 = vpop.f32.mrb[0].mxu0
        %v424 = vadd.f32 0.0, %v423
        %425 = vdwg.mxu0
        %v426 = vld [vmem:[%s3] sm:$0xff]
        %v427 = vld [vmem:[%s3 + $0x8] sm:$0xff]
        %v428 = vld [vmem:[%s3 + $0x10] sm:$0xff]
        %v429 = vld [vmem:[%s3 + $0x18] sm:$0xff]
        %431 = vset.pattern.permute.xlu0 0
        %432 = vperm.xlu0 %431, %v426
        %v433 = vpop.permute.xlu0 %432
        %436 = vset.pattern.permute.xlu0 0
        %437 = vperm.xlu0 %436, %v427
        %v438 = vpop.permute.xlu0 %437
        %441 = vset.pattern.permute.xlu0 0
        %442 = vperm.xlu0 %441, %v428
        %v443 = vpop.permute.xlu0 %442
        %446 = vset.pattern.permute.xlu0 0
        %447 = vperm.xlu0 %446, %v429
        %v448 = vpop.permute.xlu0 %447
        %v450 = vmul.f32 %v404, %v433
        %v451 = vmul.f32 %v406, %v433
        %v452 = vmul.f32 %v410, %v438
        %v453 = vmul.f32 %v412, %v438
        %v454 = vmul.f32 %v416, %v443
        %v455 = vmul.f32 %v418, %v443
        %v456 = vmul.f32 %v422, %v448
        %v457 = vmul.f32 %v424, %v448
        %v458 = vld [vmem:[%s4] sm:$0xff]
        %v459 = vld [vmem:[%s4 + $0x8] sm:$0xff]
        %v460 = vld [vmem:[%s4 + $0x10] sm:$0xff]
        %v461 = vld [vmem:[%s4 + $0x18] sm:$0xff]
        %463 = vset.pattern.permute.xlu0 0
        %464 = vperm.xlu0 %463, %v458
        %v465 = vpop.permute.xlu0 %464
        %468 = vset.pattern.permute.xlu0 0
        %469 = vperm.xlu0 %468, %v459
        %v470 = vpop.permute.xlu0 %469
        %473 = vset.pattern.permute.xlu0 0
        %474 = vperm.xlu0 %473, %v460
        %v475 = vpop.permute.xlu0 %474
        %478 = vset.pattern.permute.xlu0 0
        %479 = vperm.xlu0 %478, %v461
        %v480 = vpop.permute.xlu0 %479
        %v482 = vadd.f32 %v450, %v465
        %v483 = vadd.f32 %v451, %v465
        %v484 = vadd.f32 %v452, %v470
        %v485 = vadd.f32 %v453, %v470
        %v486 = vadd.f32 %v454, %v475
        %v487 = vadd.f32 %v455, %v475
        %v488 = vadd.f32 %v456, %v480
        %v489 = vadd.f32 %v457, %v480
        %v490 = vxor.u32 %v482, 2147483648
        %v491 = vxor.u32 %v483, 2147483648
        %v492 = vxor.u32 %v484, 2147483648
        %v493 = vxor.u32 %v485, 2147483648
        %v494 = vxor.u32 %v486, 2147483648
        %v495 = vxor.u32 %v487, 2147483648
        %v496 = vxor.u32 %v488, 2147483648
        %v497 = vxor.u32 %v489, 2147483648
        %v498 = vmul.f32 %v490, 1.442695
        %v499 = vpow.pop %v498
        %v500 = vmul.f32 %v491, 1.442695
        %v501 = vpow.pop %v500
        %v502 = vmul.f32 %v492, 1.442695
        %v503 = vpow.pop %v502
        %v504 = vmul.f32 %v493, 1.442695
        %v505 = vpow.pop %v504
        %v506 = vmul.f32 %v494, 1.442695
        %v507 = vpow.pop %v506
        %v508 = vmul.f32 %v495, 1.442695
        %v509 = vpow.pop %v508
        %v510 = vmul.f32 %v496, 1.442695
        %v511 = vpow.pop %v510
        %v512 = vmul.f32 %v497, 1.442695
        %v513 = vpow.pop %v512
        %v514 = vadd.f32 %v499, 1.0
        %v515 = vadd.f32 %v501, 1.0
        %v516 = vadd.f32 %v503, 1.0
        %v517 = vadd.f32 %v505, 1.0
        %v518 = vadd.f32 %v507, 1.0
        %v519 = vadd.f32 %v509, 1.0
        %v520 = vadd.f32 %v511, 1.0
        %v521 = vadd.f32 %v513, 1.0
        %v522 = vrcp.pop %v514
        %v523 = vmul.f32 1.0, %v522
        %v524 = vrcp.pop %v515
        %v525 = vmul.f32 1.0, %v524
        %v526 = vrcp.pop %v516
        %v527 = vmul.f32 1.0, %v526
        %v528 = vrcp.pop %v517
        %v529 = vmul.f32 1.0, %v528
        %v530 = vrcp.pop %v518
        %v531 = vmul.f32 1.0, %v530
        %v532 = vrcp.pop %v519
        %v533 = vmul.f32 1.0, %v532
        %v534 = vrcp.pop %v520
        %v535 = vmul.f32 1.0, %v534
        %v536 = vrcp.pop %v521
        %v537 = vmul.f32 1.0, %v536
        %v538 = vmul.f32 %v482, %v523
        %v539 = vmul.f32 %v483, %v525
        %v540 = vmul.f32 %v484, %v527
        %v541 = vmul.f32 %v485, %v529
        %v542 = vmul.f32 %v486, %v531
        %v543 = vmul.f32 %v487, %v533
        %v544 = vmul.f32 %v488, %v535
        %v545 = vmul.f32 %v489, %v537
        %546 = vst [vmem:[%s249] sm:$0xff] %v538
        %547 = vst [vmem:[%s249 + $0x8] sm:$0xff] %v539
        %548 = vst [vmem:[%s249 + $0x10] sm:$0xff] %v540
        %549 = vst [vmem:[%s249 + $0x18] sm:$0xff] %v541
        %550 = vst [vmem:[%s249 + $0x20] sm:$0xff] %v542
        %551 = vst [vmem:[%s249 + $0x28] sm:$0xff] %v543
        %552 = vst [vmem:[%s249 + $0x30] sm:$0xff] %v544
        %553 = vst [vmem:[%s249 + $0x38] sm:$0xff] %v545
        %s554 = sand.u32 %s143, 1
        %s555 = sand.u32 %s143, 1
        %s556 = smul.addr %s555, 64
        %s557 = scalar_lea.vmem [#allocation2], %s556
        // Predicated region
        $region41: #{upsample_block.3} parent=39 // pred_check
          %p558 = pneg %p153
        $region42: #{upsample_block.3} parent=39 // pred_check_branch
          %560 = sbr.rel (%p558) target = $region44
        $region43: #{upsample_block.3} parent=39 // pred_region
          %s561 = smul.u32 2, %s16
          %s562 = smul.addr %s561, 8
          %s563 = scalar_lea.vmem %s5, %s562
          // Predicated region
          $region45: #{upsample_block.3} parent=43 // pred_check
            _
          $region46: #{upsample_block.3} parent=43 // pred_check_branch
            %565 = sbr.rel (0) target = $region48
          $region47: #{upsample_block.3} parent=43 // pred_region
            // Predicated region
            $region49: #{upsample_block.3} parent=47 // pred_check
              _
            $region50: #{upsample_block.3} parent=47 // pred_check_branch
              %567 = sbr.rel (0) target = $region52
            $region51: #{upsample_block.3} parent=47 // pred_region
              loop: start=0, step=1, limit=1
              $region53: #{upsample_block.3} parent=51 // loop_pre_header
                _
              $region54: #{upsample_block.3} parent=51 // loop_header
                %s569 = sphi 0, %s573
                %p570 = scmp.ge.s32.totalorder %s569, 1
                %s574 = sphi %s557, %s557
                %s575 = sphi %s563, %s563
              $region55: #{upsample_block.3} parent=51 // loop_header_branch
                %572 = sbr.rel (%p570) target = $region59
              $region56: #{upsample_block.3} parent=51 // loop_body
                %v576 = vld [vmem:[%s574] sm:$0xff]
                %577 = vst [vmem:[%s575] sm:$0xff] %v576
                %v578 = vld [vmem:[%s574 + $0x8] sm:$0xff]
                %579 = vst [vmem:[%s575 + $0x8] sm:$0xff] %v578
                %v580 = vld [vmem:[%s574 + $0x10] sm:$0xff]
                %581 = vst [vmem:[%s575 + $0x30] sm:$0xff] %v580
                %v582 = vld [vmem:[%s574 + $0x18] sm:$0xff]
                %583 = vst [vmem:[%s575 + $0x38] sm:$0xff] %v582
                %v584 = vld [vmem:[%s574 + $0x20] sm:$0xff]
                %585 = vst [vmem:[%s575 + $0x60] sm:$0xff] %v584
                %v586 = vld [vmem:[%s574 + $0x28] sm:$0xff]
                %587 = vst [vmem:[%s575 + $0x68] sm:$0xff] %v586
                %v588 = vld [vmem:[%s574 + $0x30] sm:$0xff]
                %589 = vst [vmem:[%s575 + $0x90] sm:$0xff] %v588
                %v590 = vld [vmem:[%s574 + $0x38] sm:$0xff]
                %591 = vst [vmem:[%s575 + $0x98] sm:$0xff] %v590
              $region57: #{upsample_block.3} parent=51 // loop_footer
                %s573 = sadd.s32 1, %s569
              $region58: #{upsample_block.3} parent=51 // loop_footer_branch
                %568 = sbr.rel target = $region54
              $region59: #{upsample_block.3} parent=51 // loop_exit
                _
            $region52: #{upsample_block.3} parent=47 // pred_fallthru
              _
            // Predicated region
            $region60: #{upsample_block.3} parent=47 // pred_check
              _
            $region61: #{upsample_block.3} parent=47 // pred_check_branch
              %593 = sbr.rel target = $region63
            $region62: #{upsample_block.3} parent=47 // pred_region
              _
            $region63: #{upsample_block.3} parent=47 // pred_fallthru
              _
          $region48: #{upsample_block.3} parent=43 // pred_fallthru
            _
          %594 = vnop
        $region44: #{upsample_block.3} parent=39 // pred_fallthru
          _
      $region40: #{upsample_block.3} parent=5 // pred_fallthru
        _
      %p595 = scmp.le.s32.totalorder 2, %s11
      // Predicated region
      $region64: #{upsample_block.3} parent=5 // pred_check
        %p596 = pneg %p595
      $region65: #{upsample_block.3} parent=5 // pred_check_branch
        %598 = sbr.rel (%p596) target = $region67
      $region66: #{upsample_block.3} parent=5 // pred_region
        %s599 = ssub.s32 %s11, 2
        // Predicated region
        $region68: #{upsample_block.3} parent=66 // pred_check
          %p600 = pneg %p159
        $region69: #{upsample_block.3} parent=66 // pred_check_branch
          %602 = sbr.rel (%p600) target = $region71
        $region70: #{upsample_block.3} parent=66 // pred_region
          %s603 = sand.u32 %s144, 1
          %s604 = sand.u32 %s144, 1
          %s605 = smul.addr %s604, 64
          %s606 = scalar_lea.vmem [#allocation2], %s605
        $region71: #{upsample_block.3} parent=66 // pred_fallthru
          _
      $region67: #{upsample_block.3} parent=5 // pred_fallthru
        _
    $region6: #{upsample_block.3} parent=1 // loop_footer
      %s15 = sadd.s32 1, %s11
    $region7: #{upsample_block.3} parent=1 // loop_footer_branch
      %10 = sbr.rel target = $region3
    $region8: #{upsample_block.3} parent=1 // loop_exit
      _

</llo_original>
